<compile_context>
chip_gen: v7x
topology: tpu7x:2x2x1
jax: 0.10.0
libtpu: 0.0.40
codegen_flags: <defaults>
</compile_context>

<pallas_src>
import functools

import jax
import jax.numpy as jnp
from jax.experimental import pallas as pl
from jax.experimental.pallas import tpu as pltpu


# ---------------------------------------------------------------------------
# Tiled matmul (+ bias + optional LeakyReLU) kernel
# ---------------------------------------------------------------------------

def _matmul_bias_act_kernel(x_ref, w_ref, b_ref, o_ref, acc_ref, *,
                            apply_act, negative_slope):
    k = pl.program_id(2)

    @pl.when(k == 0)
    def _():
        acc_ref[...] = jnp.zeros_like(acc_ref)

    acc_ref[...] += jnp.dot(x_ref[...], w_ref[...],
                            preferred_element_type=jnp.float32)

    @pl.when(k == pl.num_programs(2) - 1)
    def _():
        out = acc_ref[...] + b_ref[...]            # bias only in the epilogue
        if apply_act:                              # LeakyReLU
            out = jnp.where(out >= 0.0, out, negative_slope * out)
        o_ref[...] = out.astype(o_ref.dtype)


def _pick_tile(dim, target):
    # dims are padded to multiples of 128, so a multiple-of-128 divisor always exists.
    assert dim % 128 == 0
    t = min(target, dim)
    while dim % t != 0:
        t -= 128
    return t


def pallas_matmul_bias_act(x, w, b, *, apply_act, negative_slope=0.01,
                           out_dtype=jnp.float32,
                           tm_target=256, tn_target=256, tk_target=512):
    m, k_dim = x.shape
    _, n = w.shape
    tm = _pick_tile(m, tm_target)
    tn = _pick_tile(n, tn_target)
    tk = _pick_tile(k_dim, tk_target)
    grid = (m // tm, n // tn, k_dim // tk)

    flops = 2 * m * n * k_dim
    bytes_accessed = (x.size * x.dtype.itemsize + w.size * w.dtype.itemsize
                      + b.size * b.dtype.itemsize
                      + m * n * jnp.dtype(out_dtype).itemsize)

    kernel = functools.partial(_matmul_bias_act_kernel,
                               apply_act=apply_act,
                               negative_slope=negative_slope)
    return pl.pallas_call(
        kernel,
        out_shape=jax.ShapeDtypeStruct((m, n), out_dtype),
        grid=grid,
        in_specs=[
            pl.BlockSpec((tm, tk), lambda i, j, kk: (i, kk)),
            pl.BlockSpec((tk, tn), lambda i, j, kk: (kk, j)),
            pl.BlockSpec((1, tn), lambda i, j, kk: (0, j)),
        ],
        out_specs=pl.BlockSpec((tm, tn), lambda i, j, kk: (i, j)),
        scratch_shapes=[pltpu.VMEM((tm, tn), jnp.float32)],
        compiler_params=pltpu.CompilerParams(
            dimension_semantics=("parallel", "parallel", "arbitrary"),
            vmem_limit_bytes=32 * 1024 * 1024),
        cost_estimate=pl.CostEstimate(flops=flops, transcendentals=0,
                                      bytes_accessed=bytes_accessed),
    )(x, w, b)


# ---------------------------------------------------------------------------
# Fully fused kernel for tiny graphs (everything resident in VMEM, one call)
# ---------------------------------------------------------------------------

def _make_fused_gcn_kernel(num_layers, negative_slope):
    def kernel(*refs):
        a_ref, x_ref, wi_ref, bi_ref = refs[:4]
        layer_refs = refs[4:4 + 2 * num_layers]
        o_ref = refs[4 + 2 * num_layers]

        a = a_ref[...]                                                     # bf16
        h = jnp.dot(x_ref[...], wi_ref[...],
                    preferred_element_type=jnp.float32) + bi_ref[...]      # input_proj (f32)
        for li in range(num_layers):
            w = layer_refs[2 * li][...]                                    # bf16
            b = layer_refs[2 * li + 1][...]                                # f32
            hw = jnp.dot(h.astype(w.dtype), w,
                         preferred_element_type=jnp.float32)
            h = jnp.dot(a, hw.astype(a.dtype),
                        preferred_element_type=jnp.float32) + b
            if li < num_layers - 1:                                        # act on all but last
                h = jnp.where(h >= 0.0, h, negative_slope * h)
        o_ref[...] = h.astype(o_ref.dtype)
    return kernel


def _full_spec(shape):
    return pl.BlockSpec(shape, lambda: (0,) * len(shape))


def pallas_fused_gcn(a_p, x_p, w_in_p, b_in_p, layers_p, *, negative_slope=0.01):
    n_pad = a_p.shape[0]
    d_out_pad = layers_p[-1][0].shape[1]
    operands = [a_p, x_p, w_in_p, b_in_p]
    for w, b in layers_p:
        operands += [w, b]

    flops = 2 * x_p.shape[0] * x_p.shape[1] * w_in_p.shape[1]
    for w, _ in layers_p:
        flops += 2 * n_pad * w.shape[0] * w.shape[1]
        flops += 2 * n_pad * n_pad * w.shape[1]
    bytes_accessed = (sum(o.size * o.dtype.itemsize for o in operands)
                      + n_pad * d_out_pad * 4)

    kernel = _make_fused_gcn_kernel(len(layers_p), negative_slope)
    return pl.pallas_call(
        kernel,
        out_shape=jax.ShapeDtypeStruct((n_pad, d_out_pad), jnp.float32),
        grid=(),
        in_specs=[_full_spec(o.shape) for o in operands],
        out_specs=_full_spec((n_pad, d_out_pad)),
        compiler_params=pltpu.CompilerParams(vmem_limit_bytes=32 * 1024 * 1024),
        cost_estimate=pl.CostEstimate(flops=flops, transcendentals=0,
                                      bytes_accessed=bytes_accessed),
    )(*operands)


# ---------------------------------------------------------------------------
# Plain-JAX glue
# ---------------------------------------------------------------------------

def _round_up(v, m):
    return ((v + m - 1) // m) * m


def _pad2d(x, rows, cols):
    r, c = x.shape
    return jnp.pad(x, ((0, rows - r), (0, cols - c)))


def normalized_adjacency(edge_index, num_nodes, edge_weight=None):
    """Dense GCN-normalized adjacency: D^-1/2 (A + I) D^-1/2 (messages flow src->dst)."""
    src, dst = edge_index[0], edge_index[1]
    if edge_weight is None:
        edge_weight = jnp.ones(src.shape[0], dtype=jnp.float32)
    adj = jnp.zeros((num_nodes, num_nodes), jnp.float32).at[dst, src].add(edge_weight)
    adj = adj + jnp.eye(num_nodes, dtype=jnp.float32)      # add_self_loops
    deg = adj.sum(axis=1)
    dinv = jnp.where(deg > 0, 1.0 / jnp.sqrt(deg), 0.0)
    return dinv[:, None] * adj * dinv[None, :]


def init_gcn_lora_params(key, input_dim, hidden_dim=None, out_dim=None, num_layer=3):
    """Deterministic synthetic parameters matching BaseGNNLoRA.__init__ shapes (r=0)."""
    if hidden_dim is None:
        hidden_dim = int(0.618 * input_dim)
    if out_dim is None:
        out_dim = hidden_dim
    dims = [hidden_dim] * (num_layer - 1) + [out_dim]
    keys = jax.random.split(key, 2 * (num_layer + 1))

    def lin(kw, kb, d_in, d_out):
        w = jax.random.normal(kw, (d_in, d_out), jnp.float32) * (1.0 / jnp.sqrt(d_in))
        b = jax.random.normal(kb, (1, d_out), jnp.float32) * 0.01
        return w, b

    params = {"input_proj": lin(keys[0], keys[1], input_dim, hidden_dim), "layers": []}
    d_in = hidden_dim
    for li, d_out_i in enumerate(dims):
        params["layers"].append(lin(keys[2 + 2 * li], keys[3 + 2 * li], d_in, d_out_i))
        d_in = d_out_i
    # TODO(synk): r>0 LoRA adapters (W + alpha/r * A@B per conv) not instantiated since r=0.
    return params


_FUSED_VMEM_BUDGET = 8 * 1024 * 1024   # operand bytes threshold for the single-call path


def gcn_lora_forward(params, x, edge_index, *, drop_ratio=0.0,
                     negative_slope=0.01, batch=None, use_fused=None):
    """Matches BaseGNNLoRA.forward (GCNConv, r=0) with batch=None, JK='last',
    eval-mode dropout (identity)."""
    del drop_ratio, batch
    n, d_in = x.shape
    w_in, b_in = params["input_proj"]
    layers = params["layers"]
    d_hidden = w_in.shape[1]
    d_out = layers[-1][0].shape[1]

    # ---- pad to lane-dense (multiple-of-128) shapes; bf16 MXU operands, f32 biases ----
    n_pad = _round_up(n, 128)
    d_in_pad = _round_up(d_in, 128)
    d_h_pad = _round_up(d_hidden, 128)

    a_norm = normalized_adjacency(edge_index, n)
    a_p = _pad2d(a_norm, n_pad, n_pad).astype(jnp.bfloat16)
    x_p = _pad2d(x, n_pad, d_in_pad).astype(jnp.bfloat16)
    w_in_p = _pad2d(w_in, d_in_pad, d_h_pad).astype(jnp.bfloat16)
    b_in_p = _pad2d(b_in, 1, d_h_pad)                      # f32

    layers_p = []
    d_prev_pad = d_h_pad
    for w, b in layers:
        d_cur_pad = _round_up(w.shape[1], 128)
        layers_p.append((_pad2d(w, d_prev_pad, d_cur_pad).astype(jnp.bfloat16),
                         _pad2d(b, 1, d_cur_pad)))
        d_prev_pad = d_cur_pad

    if use_fused is None:
        operand_bytes = (a_p.size * 2 + x_p.size * 2 + w_in_p.size * 2 + b_in_p.size * 4
                         + sum(w.size * 2 + b.size * 4 for w, b in layers_p)
                         + n_pad * d_prev_pad * 4)
        use_fused = operand_bytes <= _FUSED_VMEM_BUDGET

    if use_fused:
        h = pallas_fused_gcn(a_p, x_p, w_in_p, b_in_p, layers_p,
                             negative_slope=negative_slope)
    else:
        # input_proj
        h = pallas_matmul_bias_act(x_p, w_in_p, b_in_p, apply_act=False,
                                   out_dtype=jnp.bfloat16)
        # GCN layers: two tiled stages each (HW = H @ W, then OUT = A_norm @ HW + b).
        # TODO(synk): A_norm is re-streamed from HBM once per layer; block-sparse /
        # cross-layer A residency not implemented.
        for li, (w_p, b_p) in enumerate(layers_p):
            is_last = li == len(layers_p) - 1
            zero_b = jnp.zeros((1, w_p.shape[1]), jnp.float32)
            hw = pallas_matmul_bias_act(h, w_p, zero_b, apply_act=False,
                                        out_dtype=jnp.bfloat16)
            h = pallas_matmul_bias_act(
                a_p, hw, b_p, apply_act=not is_last,
                negative_slope=negative_slope,
                out_dtype=jnp.float32 if is_last else jnp.bfloat16)

    return h[:n, :d_out].astype(jnp.float32)   # JK='last', batch=None -> node_emb


def gcn_lora_forward_ref(params, x, edge_index, *, negative_slope=0.01):
    """Pure-JAX f32 reference for correctness checking."""
    n = x.shape[0]
    a_norm = normalized_adjacency(edge_index, n)
    w_in, b_in = params["input_proj"]
    h = x @ w_in + b_in
    layers = params["layers"]
    for w, b in layers[:-1]:
        h = a_norm @ (h @ w) + b
        h = jnp.where(h >= 0.0, h, negative_slope * h)
    w, b = layers[-1]
    return a_norm @ (h @ w) + b


# ---------------------------------------------------------------------------
# Demo
# ---------------------------------------------------------------------------

if __name__ == "__main__":
    key = jax.random.PRNGKey(0)
    k_x, k_p = jax.random.split(key)

    num_nodes = 8
    input_dim = 32
    num_layer = 3

    # Node features.
    x = jax.random.normal(k_x, (num_nodes, input_dim), jnp.float32)

    # Small bidirectional ring graph, edge_index shape [2, E].
    src = jnp.arange(num_nodes, dtype=jnp.int32)
    dst = (src + 1) % num_nodes
    edge_index = jnp.concatenate(
        [jnp.stack([src, dst], axis=0), jnp.stack([dst, src], axis=0)], axis=1
    )

    params = init_gcn_lora_params(k_p, input_dim, num_layer=num_layer)

    ref = gcn_lora_forward_ref(params, x, edge_index)

    # Fused single-call fast path (auto-selected for tiny graphs).
    out_fused = jax.block_until_ready(gcn_lora_forward(params, x, edge_index))
    # General tiled multi-call path (what large graphs would use).
    out_tiled = jax.block_until_ready(
        gcn_lora_forward(params, x, edge_index, use_fused=False))

    assert out_fused.shape == ref.shape and out_tiled.shape == ref.shape
    # bf16 MXU operands -> loosened tolerance vs the f32 reference.
    assert jnp.allclose(out_fused, ref, atol=1e-1, rtol=1e-1), "fused mismatch vs reference"
    assert jnp.allclose(out_tiled, ref, atol=1e-1, rtol=1e-1), "tiled mismatch vs reference"
    assert jnp.allclose(out_fused, out_tiled, atol=2e-2, rtol=2e-2), "fused vs tiled mismatch"

    print("KERNEL_OK")
</pallas_src>

<mosaic_0001>
module attributes {stable_mosaic.version = 11 : i64} {
  func.func @kernel(%arg0: memref<128x128xbf16, #tpu.memory_space<vmem>>, %arg1: memref<128x128xbf16, #tpu.memory_space<vmem>>, %arg2: memref<128x128xbf16, #tpu.memory_space<vmem>>, %arg3: memref<1x128xf32, #tpu.memory_space<vmem>>, %arg4: memref<128x128xbf16, #tpu.memory_space<vmem>>, %arg5: memref<1x128xf32, #tpu.memory_space<vmem>>, %arg6: memref<128x128xbf16, #tpu.memory_space<vmem>>, %arg7: memref<1x128xf32, #tpu.memory_space<vmem>>, %arg8: memref<128x128xbf16, #tpu.memory_space<vmem>>, %arg9: memref<1x128xf32, #tpu.memory_space<vmem>>, %arg10: memref<128x128xf32, #tpu.memory_space<vmem>>) attributes {dimension_semantics = [], scalar_prefetch = 0 : i64, scratch_operands = 0 : i64, tpu.core_type = #tpu.core_type<tc>} {
    %c0 = arith.constant 0 : index
    %c0_0 = arith.constant 0 : index
    %0 = vector.load %arg0[%c0, %c0_0] : memref<128x128xbf16, #tpu.memory_space<vmem>>, vector<128x128xbf16>
    %c0_1 = arith.constant 0 : index
    %c0_2 = arith.constant 0 : index
    %1 = vector.load %arg1[%c0_1, %c0_2] : memref<128x128xbf16, #tpu.memory_space<vmem>>, vector<128x128xbf16>
    %c0_3 = arith.constant 0 : index
    %c0_4 = arith.constant 0 : index
    %2 = vector.load %arg2[%c0_3, %c0_4] : memref<128x128xbf16, #tpu.memory_space<vmem>>, vector<128x128xbf16>
    %cst = arith.constant dense<0.000000e+00> : vector<128x128xf32>
    %3 = tpu.matmul %1, %2, %cst {dimension_numbers = #tpu.dot_dimension_numbers<[1], [0], [0], [1], [0, 0, 1, 1], [], []>} : vector<128x128xbf16>, vector<128x128xbf16>, vector<128x128xf32> -> vector<128x128xf32>
    %c0_5 = arith.constant 0 : index
    %c0_6 = arith.constant 0 : index
    %4 = vector.load %arg3[%c0_5, %c0_6] : memref<1x128xf32, #tpu.memory_space<vmem>>, vector<1x128xf32>
    %5 = vector.broadcast %4 : vector<1x128xf32> to vector<128x128xf32>
    %6 = arith.addf %3, %5 : vector<128x128xf32>
    %c0_7 = arith.constant 0 : index
    %c0_8 = arith.constant 0 : index
    %7 = vector.load %arg4[%c0_7, %c0_8] : memref<128x128xbf16, #tpu.memory_space<vmem>>, vector<128x128xbf16>
    %c0_9 = arith.constant 0 : index
    %c0_10 = arith.constant 0 : index
    %8 = vector.load %arg5[%c0_9, %c0_10] : memref<1x128xf32, #tpu.memory_space<vmem>>, vector<1x128xf32>
    %9 = arith.truncf %6 : vector<128x128xf32> to vector<128x128xbf16>
    %cst_11 = arith.constant dense<0.000000e+00> : vector<128x128xf32>
    %10 = tpu.matmul %9, %7, %cst_11 {dimension_numbers = #tpu.dot_dimension_numbers<[1], [0], [0], [1], [0, 0, 1, 1], [], []>} : vector<128x128xbf16>, vector<128x128xbf16>, vector<128x128xf32> -> vector<128x128xf32>
    %11 = arith.truncf %10 : vector<128x128xf32> to vector<128x128xbf16>
    %cst_12 = arith.constant dense<0.000000e+00> : vector<128x128xf32>
    %12 = tpu.matmul %0, %11, %cst_12 {dimension_numbers = #tpu.dot_dimension_numbers<[1], [0], [0], [1], [0, 0, 1, 1], [], []>} : vector<128x128xbf16>, vector<128x128xbf16>, vector<128x128xf32> -> vector<128x128xf32>
    %13 = vector.broadcast %8 : vector<1x128xf32> to vector<128x128xf32>
    %14 = arith.addf %12, %13 : vector<128x128xf32>
    %cst_13 = arith.constant 0.000000e+00 : f32
    %15 = vector.broadcast %cst_13 : f32 to vector<128x128xf32>
    %16 = arith.cmpf oge, %14, %15 : vector<128x128xf32>
    %cst_14 = arith.constant 0.00999999977 : f32
    %17 = vector.broadcast %cst_14 : f32 to vector<128x128xf32>
    %18 = arith.mulf %17, %14 : vector<128x128xf32>
    %19 = arith.select %16, %14, %18 : vector<128x128xi1>, vector<128x128xf32>
    %c0_15 = arith.constant 0 : index
    %c0_16 = arith.constant 0 : index
    %20 = vector.load %arg6[%c0_15, %c0_16] : memref<128x128xbf16, #tpu.memory_space<vmem>>, vector<128x128xbf16>
    %c0_17 = arith.constant 0 : index
    %c0_18 = arith.constant 0 : index
    %21 = vector.load %arg7[%c0_17, %c0_18] : memref<1x128xf32, #tpu.memory_space<vmem>>, vector<1x128xf32>
    %22 = arith.truncf %19 : vector<128x128xf32> to vector<128x128xbf16>
    %cst_19 = arith.constant dense<0.000000e+00> : vector<128x128xf32>
    %23 = tpu.matmul %22, %20, %cst_19 {dimension_numbers = #tpu.dot_dimension_numbers<[1], [0], [0], [1], [0, 0, 1, 1], [], []>} : vector<128x128xbf16>, vector<128x128xbf16>, vector<128x128xf32> -> vector<128x128xf32>
    %24 = arith.truncf %23 : vector<128x128xf32> to vector<128x128xbf16>
    %cst_20 = arith.constant dense<0.000000e+00> : vector<128x128xf32>
    %25 = tpu.matmul %0, %24, %cst_20 {dimension_numbers = #tpu.dot_dimension_numbers<[1], [0], [0], [1], [0, 0, 1, 1], [], []>} : vector<128x128xbf16>, vector<128x128xbf16>, vector<128x128xf32> -> vector<128x128xf32>
    %26 = vector.broadcast %21 : vector<1x128xf32> to vector<128x128xf32>
    %27 = arith.addf %25, %26 : vector<128x128xf32>
    %cst_21 = arith.constant 0.000000e+00 : f32
    %28 = vector.broadcast %cst_21 : f32 to vector<128x128xf32>
    %29 = arith.cmpf oge, %27, %28 : vector<128x128xf32>
    %cst_22 = arith.constant 0.00999999977 : f32
    %30 = vector.broadcast %cst_22 : f32 to vector<128x128xf32>
    %31 = arith.mulf %30, %27 : vector<128x128xf32>
    %32 = arith.select %29, %27, %31 : vector<128x128xi1>, vector<128x128xf32>
    %c0_23 = arith.constant 0 : index
    %c0_24 = arith.constant 0 : index
    %33 = vector.load %arg8[%c0_23, %c0_24] : memref<128x128xbf16, #tpu.memory_space<vmem>>, vector<128x128xbf16>
    %c0_25 = arith.constant 0 : index
    %c0_26 = arith.constant 0 : index
    %34 = vector.load %arg9[%c0_25, %c0_26] : memref<1x128xf32, #tpu.memory_space<vmem>>, vector<1x128xf32>
    %35 = arith.truncf %32 : vector<128x128xf32> to vector<128x128xbf16>
    %cst_27 = arith.constant dense<0.000000e+00> : vector<128x128xf32>
    %36 = tpu.matmul %35, %33, %cst_27 {dimension_numbers = #tpu.dot_dimension_numbers<[1], [0], [0], [1], [0, 0, 1, 1], [], []>} : vector<128x128xbf16>, vector<128x128xbf16>, vector<128x128xf32> -> vector<128x128xf32>
    %37 = arith.truncf %36 : vector<128x128xf32> to vector<128x128xbf16>
    %cst_28 = arith.constant dense<0.000000e+00> : vector<128x128xf32>
    %38 = tpu.matmul %0, %37, %cst_28 {dimension_numbers = #tpu.dot_dimension_numbers<[1], [0], [0], [1], [0, 0, 1, 1], [], []>} : vector<128x128xbf16>, vector<128x128xbf16>, vector<128x128xf32> -> vector<128x128xf32>
    %39 = vector.broadcast %34 : vector<1x128xf32> to vector<128x128xf32>
    %40 = arith.addf %38, %39 : vector<128x128xf32>
    %c0_29 = arith.constant 0 : index
    %c0_30 = arith.constant 0 : index
    %41 = vector.load %arg10[%c0_29, %c0_30] : memref<128x128xf32, #tpu.memory_space<vmem>>, vector<128x128xf32>
    tpu.vector_store %arg10[%c0_29, %c0_30], %40 {strides = array<i32>} : memref<128x128xf32, #tpu.memory_space<vmem>>, vector<128x128xf32>,
    return
  }
}

</mosaic_0001>

<llo_original>
// kernel: tpu_custom_call.1
$region0: #{tpu_custom_call.1}
  #allocation0 [shape = 'u32[]', space=smem, size = 0x4, offset = 0x4, fixed_abs, tag = 'smem constant byte address 0x4 - core index']
  #allocation1 [shape = 'u32[144,128]{1,0:T(1,128)}', space=vmem, size = 0x12000, scoped, tag = 'internal scratch']
  %s0 = inlined_call_operand.hbm [shape: bf16[128,128], index: 0, kind: input, shape index: {}]
  %s1 = inlined_call_operand.hbm [shape: bf16[128,128], index: 1, kind: input, shape index: {}]
  %s2 = inlined_call_operand.hbm [shape: bf16[128,128], index: 2, kind: input, shape index: {}]
  %s3 = inlined_call_operand.vmem [shape: f32[1,128], index: 3, kind: input, shape index: {}]
  %s4 = inlined_call_operand.hbm [shape: bf16[128,128], index: 4, kind: input, shape index: {}]
  %s5 = inlined_call_operand.vmem [shape: f32[1,128], index: 5, kind: input, shape index: {}]
  %s6 = inlined_call_operand.hbm [shape: bf16[128,128], index: 6, kind: input, shape index: {}]
  %s7 = inlined_call_operand.vmem [shape: f32[1,128], index: 7, kind: input, shape index: {}]
  %s8 = inlined_call_operand.hbm [shape: bf16[128,128], index: 8, kind: input, shape index: {}]
  %s9 = inlined_call_operand.vmem [shape: f32[1,128], index: 9, kind: input, shape index: {}]
  %s10 = inlined_call_operand.hbm [shape: f32[128,128], index: 10, kind: output, shape index: {}]
  %s11 = sld [smem:[#allocation0]]
  $region74: #{tpu_custom_call.1} parent=0
    _
  %s13 = ssub.s32 1, %s11
  %s14 = scalar_select 0, %s13, %s11
  $region1: #{tpu_custom_call.1} parent=0
    #allocation2 [shape = 'u8[32768]{0}', space=vmem, size = 0x8000, scoped, tag = 'input window, operand 0, single buffered']
    #allocation3 [shape = 's32[1]{0}', space=sflag, size = 0x4, scoped, tag = 'scoped memory for tpu_custom_call.1']
    #allocation4 [shape = 's32[1]{0}', space=sflag, size = 0x4, scoped, tag = 'scoped memory for tpu_custom_call.1']
    #allocation5 [shape = 'u8[32768]{0}', space=vmem, size = 0x8000, scoped, tag = 'input window, operand 1, single buffered']
    #allocation6 [shape = 's32[1]{0}', space=sflag, size = 0x4, scoped, tag = 'scoped memory for tpu_custom_call.1']
    #allocation7 [shape = 'u8[32768]{0}', space=vmem, size = 0x8000, scoped, tag = 'input window, operand 2, single buffered']
    #allocation8 [shape = 'u8[32768]{0}', space=vmem, size = 0x8000, scoped, tag = 'input window, operand 4, single buffered']
    #allocation9 [shape = 's32[1]{0}', space=sflag, size = 0x4, scoped, tag = 'scoped memory for tpu_custom_call.1']
    #allocation10 [shape = 'u8[32768]{0}', space=vmem, size = 0x8000, scoped, tag = 'input window, operand 6, single buffered']
    #allocation11 [shape = 'u8[32768]{0}', space=vmem, size = 0x8000, scoped, tag = 'input window, operand 8, single buffered']
    #allocation12 [shape = 's32[1]{0}', space=sflag, size = 0x4, scoped, tag = 'scoped memory for tpu_custom_call.1']
    #allocation13 [shape = 'u8[65536]{0}', space=vmem, size = 0x10000, scoped, tag = 'output window, operand 0, single buffered']
    %15 = vsyncpa [#allocation3], 0
    %16 = vsyncpa [#allocation6], 0
    %17 = vsyncpa [#allocation9], 0
    %18 = vsyncpa [#allocation12], 0
    %19 = vsyncpa [#allocation4], 0
    // Predicated region
    $region2: #{tpu_custom_call.1} parent=1 // pred_check
      _
    $region3: #{tpu_custom_call.1} parent=1 // pred_check_branch
      %21 = sbr.rel (0) target = $region5
    $region4: #{tpu_custom_call.1} parent=1 // pred_region
      %s23 = ssub.s32 1024, 1024
      %24 = vsyncadd [#allocation3], %s23
      %s25 = sshll.u32 [#allocation2], 4
      %s26 = int_to_ptr.vmem [resolvable:$true] %s25
      %31 = dma.hbm_to_vmem [thread:$0]  %s0, 1024, %s26, [#allocation3], 64, 64, 4
    $region5: #{tpu_custom_call.1} parent=1 // pred_fallthru
      _
    // Predicated region
    $region6: #{tpu_custom_call.1} parent=1 // pred_check
      _
    $region7: #{tpu_custom_call.1} parent=1 // pred_check_branch
      %33 = sbr.rel (0) target = $region9
    $region8: #{tpu_custom_call.1} parent=1 // pred_region
      %s35 = ssub.s32 1024, 1024
      %36 = vsyncadd [#allocation6], %s35
      %s37 = sshll.u32 [#allocation5], 4
      %s38 = int_to_ptr.vmem [resolvable:$true] %s37
      %43 = dma.hbm_to_vmem [thread:$0]  %s1, 1024, %s38, [#allocation6], 64, 64, 4
    $region9: #{tpu_custom_call.1} parent=1 // pred_fallthru
      _
    // Predicated region
    $region10: #{tpu_custom_call.1} parent=1 // pred_check
      _
    $region11: #{tpu_custom_call.1} parent=1 // pred_check_branch
      %45 = sbr.rel (0) target = $region13
    $region12: #{tpu_custom_call.1} parent=1 // pred_region
      %s47 = ssub.s32 1024, 1024
      %48 = vsyncadd [#allocation6], %s47
      %s49 = sshll.u32 [#allocation7], 4
      %s50 = int_to_ptr.vmem [resolvable:$true] %s49
      %55 = dma.hbm_to_vmem [thread:$0]  %s2, 1024, %s50, [#allocation6], 64, 64, 4
    $region13: #{tpu_custom_call.1} parent=1 // pred_fallthru
      _
    // Predicated region
    $region14: #{tpu_custom_call.1} parent=1 // pred_check
      _
    $region15: #{tpu_custom_call.1} parent=1 // pred_check_branch
      %57 = sbr.rel (0) target = $region17
    $region16: #{tpu_custom_call.1} parent=1 // pred_region
      _
    $region17: #{tpu_custom_call.1} parent=1 // pred_fallthru
      _
    // Predicated region
    $region18: #{tpu_custom_call.1} parent=1 // pred_check
      _
    $region19: #{tpu_custom_call.1} parent=1 // pred_check_branch
      %59 = sbr.rel (0) target = $region21
    $region20: #{tpu_custom_call.1} parent=1 // pred_region
      %s61 = ssub.s32 1024, 1024
      %62 = vsyncadd [#allocation9], %s61
      %s63 = sshll.u32 [#allocation8], 4
      %s64 = int_to_ptr.vmem [resolvable:$true] %s63
      %69 = dma.hbm_to_vmem [thread:$0]  %s4, 1024, %s64, [#allocation9], 64, 64, 4
    $region21: #{tpu_custom_call.1} parent=1 // pred_fallthru
      _
    // Predicated region
    $region22: #{tpu_custom_call.1} parent=1 // pred_check
      _
    $region23: #{tpu_custom_call.1} parent=1 // pred_check_branch
      %71 = sbr.rel (0) target = $region25
    $region24: #{tpu_custom_call.1} parent=1 // pred_region
      _
    $region25: #{tpu_custom_call.1} parent=1 // pred_fallthru
      _
    // Predicated region
    $region26: #{tpu_custom_call.1} parent=1 // pred_check
      _
    $region27: #{tpu_custom_call.1} parent=1 // pred_check_branch
      %73 = sbr.rel (0) target = $region29
    $region28: #{tpu_custom_call.1} parent=1 // pred_region
      %s75 = ssub.s32 1024, 1024
      %76 = vsyncadd [#allocation9], %s75
      %s77 = sshll.u32 [#allocation10], 4
      %s78 = int_to_ptr.vmem [resolvable:$true] %s77
      %83 = dma.hbm_to_vmem [thread:$0]  %s6, 1024, %s78, [#allocation9], 64, 64, 4
    $region29: #{tpu_custom_call.1} parent=1 // pred_fallthru
      _
    // Predicated region
    $region30: #{tpu_custom_call.1} parent=1 // pred_check
      _
    $region31: #{tpu_custom_call.1} parent=1 // pred_check_branch
      %85 = sbr.rel (0) target = $region33
    $region32: #{tpu_custom_call.1} parent=1 // pred_region
      _
    $region33: #{tpu_custom_call.1} parent=1 // pred_fallthru
      _
    // Predicated region
    $region34: #{tpu_custom_call.1} parent=1 // pred_check
      _
    $region35: #{tpu_custom_call.1} parent=1 // pred_check_branch
      %87 = sbr.rel (0) target = $region37
    $region36: #{tpu_custom_call.1} parent=1 // pred_region
      %s89 = ssub.s32 1024, 1024
      %90 = vsyncadd [#allocation12], %s89
      %s91 = sshll.u32 [#allocation11], 4
      %s92 = int_to_ptr.vmem [resolvable:$true] %s91
      %97 = dma.hbm_to_vmem [thread:$0]  %s8, 1024, %s92, [#allocation12], 64, 64, 4
    $region37: #{tpu_custom_call.1} parent=1 // pred_fallthru
      _
    // Predicated region
    $region38: #{tpu_custom_call.1} parent=1 // pred_check
      _
    $region39: #{tpu_custom_call.1} parent=1 // pred_check_branch
      %99 = sbr.rel (0) target = $region41
    $region40: #{tpu_custom_call.1} parent=1 // pred_region
      _
    $region41: #{tpu_custom_call.1} parent=1 // pred_fallthru
      _
    // Predicated region
    $region42: #{tpu_custom_call.1} parent=1 // pred_check
      _
    $region43: #{tpu_custom_call.1} parent=1 // pred_check_branch
      %101 = sbr.rel (0) target = $region45
    $region44: #{tpu_custom_call.1} parent=1 // pred_region
      %102 = dma.done [#allocation3], 1024
    $region45: #{tpu_custom_call.1} parent=1 // pred_fallthru
      _
    // Predicated region
    $region46: #{tpu_custom_call.1} parent=1 // pred_check
      _
    $region47: #{tpu_custom_call.1} parent=1 // pred_check_branch
      %104 = sbr.rel (0) target = $region49
    $region48: #{tpu_custom_call.1} parent=1 // pred_region
      %105 = dma.done [#allocation6], 1024
    $region49: #{tpu_custom_call.1} parent=1 // pred_fallthru
      _
    // Predicated region
    $region50: #{tpu_custom_call.1} parent=1 // pred_check
      _
    $region51: #{tpu_custom_call.1} parent=1 // pred_check_branch
      %107 = sbr.rel (0) target = $region53
    $region52: #{tpu_custom_call.1} parent=1 // pred_region
      %108 = dma.done [#allocation6], 1024
    $region53: #{tpu_custom_call.1} parent=1 // pred_fallthru
      _
    // Predicated region
    $region54: #{tpu_custom_call.1} parent=1 // pred_check
      _
    $region55: #{tpu_custom_call.1} parent=1 // pred_check_branch
      %110 = sbr.rel (0) target = $region57
    $region56: #{tpu_custom_call.1} parent=1 // pred_region
      %111 = dma.done [#allocation9], 1024
    $region57: #{tpu_custom_call.1} parent=1 // pred_fallthru
      _
    // Predicated region
    $region58: #{tpu_custom_call.1} parent=1 // pred_check
      _
    $region59: #{tpu_custom_call.1} parent=1 // pred_check_branch
      %113 = sbr.rel (0) target = $region61
    $region60: #{tpu_custom_call.1} parent=1 // pred_region
      %114 = dma.done [#allocation9], 1024
    $region61: #{tpu_custom_call.1} parent=1 // pred_fallthru
      _
    // Predicated region
    $region62: #{tpu_custom_call.1} parent=1 // pred_check
      _
    $region63: #{tpu_custom_call.1} parent=1 // pred_check_branch
      %116 = sbr.rel (0) target = $region65
    $region64: #{tpu_custom_call.1} parent=1 // pred_region
      %117 = dma.done [#allocation12], 1024
    $region65: #{tpu_custom_call.1} parent=1 // pred_fallthru
      _
    %v119 = vld [vmem:[#allocation2] sm:$0xf]
    %v120 = vld [vmem:[#allocation2 + $0x4] sm:$0xf]
    %v121 = vld [vmem:[#allocation2 + $0x8] sm:$0xf]
    %v122 = vld [vmem:[#allocation2 + $0xc] sm:$0xf]
    %v123 = vld [vmem:[#allocation2 + $0x10] sm:$0xf]
    %v124 = vld [vmem:[#allocation2 + $0x14] sm:$0xf]
    %v125 = vld [vmem:[#allocation2 + $0x18] sm:$0xf]
    %v126 = vld [vmem:[#allocation2 + $0x1c] sm:$0xf]
    %v127 = vld [vmem:[#allocation2 + $0x20] sm:$0xf]
    %v128 = vld [vmem:[#allocation2 + $0x24] sm:$0xf]
    %v129 = vld [vmem:[#allocation2 + $0x28] sm:$0xf]
    %v130 = vld [vmem:[#allocation2 + $0x2c] sm:$0xf]
    %v131 = vld [vmem:[#allocation2 + $0x30] sm:$0xf]
    %v132 = vld [vmem:[#allocation2 + $0x34] sm:$0xf]
    %v133 = vld [vmem:[#allocation2 + $0x38] sm:$0xf]
    %v134 = vld [vmem:[#allocation2 + $0x3c] sm:$0xf]
    %v135 = vld [vmem:[#allocation5] sm:$0xf]
    %v136 = vld [vmem:[#allocation5 + $0x4] sm:$0xf]
    %v137 = vld [vmem:[#allocation5 + $0x8] sm:$0xf]
    %v138 = vld [vmem:[#allocation5 + $0xc] sm:$0xf]
    %v139 = vld [vmem:[#allocation5 + $0x10] sm:$0xf]
    %v140 = vld [vmem:[#allocation5 + $0x14] sm:$0xf]
    %v141 = vld [vmem:[#allocation5 + $0x18] sm:$0xf]
    %v142 = vld [vmem:[#allocation5 + $0x1c] sm:$0xf]
    %v143 = vld [vmem:[#allocation5 + $0x20] sm:$0xf]
    %v144 = vld [vmem:[#allocation5 + $0x24] sm:$0xf]
    %v145 = vld [vmem:[#allocation5 + $0x28] sm:$0xf]
    %v146 = vld [vmem:[#allocation5 + $0x2c] sm:$0xf]
    %v147 = vld [vmem:[#allocation5 + $0x30] sm:$0xf]
    %v148 = vld [vmem:[#allocation5 + $0x34] sm:$0xf]
    %v149 = vld [vmem:[#allocation5 + $0x38] sm:$0xf]
    %v150 = vld [vmem:[#allocation5 + $0x3c] sm:$0xf]
    %v151 = vld [vmem:[#allocation7] sm:$0xf]
    %v152 = vld [vmem:[#allocation7 + $0x4] sm:$0xf]
    %v153 = vld [vmem:[#allocation7 + $0x8] sm:$0xf]
    %v154 = vld [vmem:[#allocation7 + $0xc] sm:$0xf]
    %v155 = vld [vmem:[#allocation7 + $0x10] sm:$0xf]
    %v156 = vld [vmem:[#allocation7 + $0x14] sm:$0xf]
    %v157 = vld [vmem:[#allocation7 + $0x18] sm:$0xf]
    %v158 = vld [vmem:[#allocation7 + $0x1c] sm:$0xf]
    %v159 = vld [vmem:[#allocation7 + $0x20] sm:$0xf]
    %v160 = vld [vmem:[#allocation7 + $0x24] sm:$0xf]
    %v161 = vld [vmem:[#allocation7 + $0x28] sm:$0xf]
    %v162 = vld [vmem:[#allocation7 + $0x2c] sm:$0xf]
    %v163 = vld [vmem:[#allocation7 + $0x30] sm:$0xf]
    %v164 = vld [vmem:[#allocation7 + $0x34] sm:$0xf]
    %v165 = vld [vmem:[#allocation7 + $0x38] sm:$0xf]
    %v166 = vld [vmem:[#allocation7 + $0x3c] sm:$0xf]
    %v167 = vld [vmem:[%s3] sm:$0x1]
    %v169 = vlaneseq
    %v170 = vshrl.u32 %v169, 7
    %v171 = vsub.s32 0, %v170
    %v172 = vrot.slane %v167, %v171
    %v190 = vunpack.c.l.b16 %v135
    %v191 = vunpack.c.l.b16 %v136
    %v192 = vunpack.c.l.b16 %v137
    %v193 = vunpack.c.l.b16 %v138
    %v194 = vunpack.c.l.b16 %v139
    %v195 = vunpack.c.l.b16 %v140
    %v196 = vunpack.c.l.b16 %v141
    %v197 = vunpack.c.l.b16 %v142
    %v198 = vunpack.c.l.b16 %v143
    %v199 = vunpack.c.l.b16 %v144
    %v200 = vunpack.c.l.b16 %v145
    %v201 = vunpack.c.l.b16 %v146
    %v202 = vunpack.c.l.b16 %v147
    %v203 = vunpack.c.l.b16 %v148
    %v204 = vunpack.c.l.b16 %v149
    %v205 = vunpack.c.l.b16 %v150
    %v206 = vpack.c.b16 %v191, %v190
    %v207 = vpack.c.b16 %v193, %v192
    %v208 = vpack.c.b16 %v195, %v194
    %v209 = vpack.c.b16 %v197, %v196
    %v210 = vpack.c.b16 %v199, %v198
    %v211 = vpack.c.b16 %v201, %v200
    %v212 = vpack.c.b16 %v203, %v202
    %v213 = vpack.c.b16 %v205, %v204
    %v238 = vunpack.c.l.b16 %v151
    %v239 = vunpack.c.l.b16 %v152
    %v240 = vunpack.c.l.b16 %v153
    %v241 = vunpack.c.l.b16 %v154
    %v242 = vunpack.c.l.b16 %v155
    %v243 = vunpack.c.l.b16 %v156
    %v244 = vunpack.c.l.b16 %v157
    %v245 = vunpack.c.l.b16 %v158
    %v246 = vunpack.c.l.b16 %v159
    %v247 = vunpack.c.l.b16 %v160
    %v248 = vunpack.c.l.b16 %v161
    %v249 = vunpack.c.l.b16 %v162
    %v250 = vunpack.c.l.b16 %v163
    %v251 = vunpack.c.l.b16 %v164
    %v252 = vunpack.c.l.b16 %v165
    %v253 = vunpack.c.l.b16 %v166
    %v254 = vpack.c.b16 %v239, %v238
    %v255 = vpack.c.b16 %v241, %v240
    %v256 = vpack.c.b16 %v243, %v242
    %v257 = vpack.c.b16 %v245, %v244
    %v258 = vpack.c.b16 %v247, %v246
    %v259 = vpack.c.b16 %v249, %v248
    %v260 = vpack.c.b16 %v251, %v250
    %v261 = vpack.c.b16 %v253, %v252
    %270 = vmatprep.subr.bf16.mxu0 0
    %271 = vmatpush1.bf16.msra.mxu0 %v254
    %272 = vmatprep.subr.bf16.mxu0 0
    %273 = vmatpush1.bf16.msra.mxu0 %v255
    %274 = vmatprep.subr.bf16.mxu0 0
    %275 = vmatpush1.bf16.msra.mxu0 %v256
    %276 = vmatprep.subr.bf16.mxu0 0
    %277 = vmatpush1.bf16.msra.mxu0 %v257
    %278 = vmatprep.subr.bf16.mxu0 0
    %279 = vmatpush1.bf16.msra.mxu0 %v258
    %280 = vmatprep.subr.bf16.mxu0 0
    %281 = vmatpush1.bf16.msra.mxu0 %v259
    %282 = vmatprep.subr.bf16.mxu0 0
    %283 = vmatpush1.bf16.msra.mxu0 %v260
    %284 = vmatprep.subr.bf16.mxu0 0
    %285 = vmatpush1.bf16.msra.mxu0 %v261
    %286 = vmatprep.subr.bf16.mxu0 0
    %287 = vmatpush1.bf16.msra.mxu0 0
    %288 = vmatprep.subr.bf16.mxu0 0
    %289 = vmatpush1.bf16.msra.mxu0 0
    %290 = vmatprep.subr.bf16.mxu0 0
    %291 = vmatpush1.bf16.msra.mxu0 0
    %292 = vmatprep.subr.bf16.mxu0 0
    %293 = vmatpush1.bf16.msra.mxu0 0
    %294 = vmatprep.subr.bf16.mxu0 0
    %295 = vmatpush1.bf16.msra.mxu0 0
    %296 = vmatprep.subr.bf16.mxu0 0
    %297 = vmatpush1.bf16.msra.mxu0 0
    %298 = vmatprep.subr.bf16.mxu0 0
    %299 = vmatpush1.bf16.msra.mxu0 0
    %300 = vmatprep.subr.bf16.mxu0 0
    %301 = vmatpush1.bf16.msra.mxu0 0
    %302 = vmatprep.mubr.bf16.mxu0 0
    %303 = vmatmul.mubr.bf16.gmra.mrb[0].mxu0 %v206
    %v304 = vpop.f32.mrb[0].mxu0
    %v305 = vadd.f32 %v172, %v304
    %v306 = vpop.f32.mrb[0].mxu0
    %v307 = vpop.f32.mrb[0].mxu0
    %v308 = vadd.f32 %v172, %v307
    %v309 = vpop.f32.mrb[0].mxu0
    %310 = vmatprep.mubr.bf16.mxu0 0
    %311 = vmatmul.mubr.bf16.gmra.mrb[0].mxu0 %v207
    %v312 = vpop.f32.mrb[0].mxu0
    %v313 = vadd.f32 %v172, %v312
    %v314 = vpop.f32.mrb[0].mxu0
    %v315 = vpop.f32.mrb[0].mxu0
    %v316 = vadd.f32 %v172, %v315
    %v317 = vpop.f32.mrb[0].mxu0
    %318 = vmatprep.mubr.bf16.mxu0 0
    %319 = vmatmul.mubr.bf16.gmra.mrb[0].mxu0 %v208
    %v320 = vpop.f32.mrb[0].mxu0
    %v321 = vadd.f32 %v172, %v320
    %v322 = vpop.f32.mrb[0].mxu0
    %v323 = vpop.f32.mrb[0].mxu0
    %v324 = vadd.f32 %v172, %v323
    %v325 = vpop.f32.mrb[0].mxu0
    %326 = vmatprep.mubr.bf16.mxu0 0
    %327 = vmatmul.mubr.bf16.gmra.mrb[0].mxu0 %v209
    %v328 = vpop.f32.mrb[0].mxu0
    %v329 = vadd.f32 %v172, %v328
    %v330 = vpop.f32.mrb[0].mxu0
    %v331 = vpop.f32.mrb[0].mxu0
    %v332 = vadd.f32 %v172, %v331
    %v333 = vpop.f32.mrb[0].mxu0
    %334 = vmatprep.mubr.bf16.mxu0 0
    %335 = vmatmul.mubr.bf16.gmra.mrb[0].mxu0 %v210
    %v336 = vpop.f32.mrb[0].mxu0
    %v337 = vadd.f32 %v172, %v336
    %v338 = vpop.f32.mrb[0].mxu0
    %v339 = vpop.f32.mrb[0].mxu0
    %v340 = vadd.f32 %v172, %v339
    %v341 = vpop.f32.mrb[0].mxu0
    %342 = vmatprep.mubr.bf16.mxu0 0
    %343 = vmatmul.mubr.bf16.gmra.mrb[0].mxu0 %v211
    %v344 = vpop.f32.mrb[0].mxu0
    %v345 = vadd.f32 %v172, %v344
    %v346 = vpop.f32.mrb[0].mxu0
    %v347 = vpop.f32.mrb[0].mxu0
    %v348 = vadd.f32 %v172, %v347
    %v349 = vpop.f32.mrb[0].mxu0
    %350 = vmatprep.mubr.bf16.mxu0 0
    %351 = vmatmul.mubr.bf16.gmra.mrb[0].mxu0 %v212
    %v352 = vpop.f32.mrb[0].mxu0
    %v353 = vadd.f32 %v172, %v352
    %v354 = vpop.f32.mrb[0].mxu0
    %v355 = vpop.f32.mrb[0].mxu0
    %v356 = vadd.f32 %v172, %v355
    %v357 = vpop.f32.mrb[0].mxu0
    %358 = vmatprep.mubr.bf16.mxu0 0
    %359 = vmatmul.mubr.bf16.gmra.mrb[0].mxu0 %v213
    %v360 = vpop.f32.mrb[0].mxu0
    %v361 = vadd.f32 %v172, %v360
    %v362 = vpop.f32.mrb[0].mxu0
    %v363 = vpop.f32.mrb[0].mxu0
    %v364 = vadd.f32 %v172, %v363
    %v365 = vpop.f32.mrb[0].mxu0
    %366 = vdwg.mxu0
    %v367 = vld [vmem:[#allocation8] sm:$0xf]
    %v368 = vld [vmem:[#allocation8 + $0x4] sm:$0xf]
    %v369 = vld [vmem:[#allocation8 + $0x8] sm:$0xf]
    %v370 = vld [vmem:[#allocation8 + $0xc] sm:$0xf]
    %v371 = vld [vmem:[#allocation8 + $0x10] sm:$0xf]
    %v372 = vld [vmem:[#allocation8 + $0x14] sm:$0xf]
    %v373 = vld [vmem:[#allocation8 + $0x18] sm:$0xf]
    %v374 = vld [vmem:[#allocation8 + $0x1c] sm:$0xf]
    %v375 = vld [vmem:[#allocation8 + $0x20] sm:$0xf]
    %v376 = vld [vmem:[#allocation8 + $0x24] sm:$0xf]
    %v377 = vld [vmem:[#allocation8 + $0x28] sm:$0xf]
    %v378 = vld [vmem:[#allocation8 + $0x2c] sm:$0xf]
    %v379 = vld [vmem:[#allocation8 + $0x30] sm:$0xf]
    %v380 = vld [vmem:[#allocation8 + $0x34] sm:$0xf]
    %v381 = vld [vmem:[#allocation8 + $0x38] sm:$0xf]
    %v382 = vld [vmem:[#allocation8 + $0x3c] sm:$0xf]
    %v383 = vld [vmem:[%s5] sm:$0x1]
    %v384 = vpack.c.bf16 %v308, %v305
    %v385 = vpack.c.bf16 %v316, %v313
    %v386 = vpack.c.bf16 %v324, %v321
    %v387 = vpack.c.bf16 %v332, %v329
    %v388 = vpack.c.bf16 %v340, %v337
    %v389 = vpack.c.bf16 %v348, %v345
    %v390 = vpack.c.bf16 %v356, %v353
    %v391 = vpack.c.bf16 %v364, %v361
    %v408 = vunpack.c.l.b16 %v367
    %v409 = vunpack.c.l.b16 %v368
    %v410 = vunpack.c.l.b16 %v369
    %v411 = vunpack.c.l.b16 %v370
    %v412 = vunpack.c.l.b16 %v371
    %v413 = vunpack.c.l.b16 %v372
    %v414 = vunpack.c.l.b16 %v373
    %v415 = vunpack.c.l.b16 %v374
    %v416 = vunpack.c.l.b16 %v375
    %v417 = vunpack.c.l.b16 %v376
    %v418 = vunpack.c.l.b16 %v377
    %v419 = vunpack.c.l.b16 %v378
    %v420 = vunpack.c.l.b16 %v379
    %v421 = vunpack.c.l.b16 %v380
    %v422 = vunpack.c.l.b16 %v381
    %v423 = vunpack.c.l.b16 %v382
    %v424 = vpack.c.b16 %v409, %v408
    %v425 = vpack.c.b16 %v411, %v410
    %v426 = vpack.c.b16 %v413, %v412
    %v427 = vpack.c.b16 %v415, %v414
    %v428 = vpack.c.b16 %v417, %v416
    %v429 = vpack.c.b16 %v419, %v418
    %v430 = vpack.c.b16 %v421, %v420
    %v431 = vpack.c.b16 %v423, %v422
    %440 = vmatprep.subr.bf16.mxu0 0
    %441 = vmatpush1.bf16.msra.mxu0 %v424
    %442 = vmatprep.subr.bf16.mxu0 0
    %443 = vmatpush1.bf16.msra.mxu0 %v425
    %444 = vmatprep.subr.bf16.mxu0 0
    %445 = vmatpush1.bf16.msra.mxu0 %v426
    %446 = vmatprep.subr.bf16.mxu0 0
    %447 = vmatpush1.bf16.msra.mxu0 %v427
    %448 = vmatprep.subr.bf16.mxu0 0
    %449 = vmatpush1.bf16.msra.mxu0 %v428
    %450 = vmatprep.subr.bf16.mxu0 0
    %451 = vmatpush1.bf16.msra.mxu0 %v429
    %452 = vmatprep.subr.bf16.mxu0 0
    %453 = vmatpush1.bf16.msra.mxu0 %v430
    %454 = vmatprep.subr.bf16.mxu0 0
    %455 = vmatpush1.bf16.msra.mxu0 %v431
    %456 = vmatprep.subr.bf16.mxu0 0
    %457 = vmatpush1.bf16.msra.mxu0 0
    %458 = vmatprep.subr.bf16.mxu0 0
    %459 = vmatpush1.bf16.msra.mxu0 0
    %460 = vmatprep.subr.bf16.mxu0 0
    %461 = vmatpush1.bf16.msra.mxu0 0
    %462 = vmatprep.subr.bf16.mxu0 0
    %463 = vmatpush1.bf16.msra.mxu0 0
    %464 = vmatprep.subr.bf16.mxu0 0
    %465 = vmatpush1.bf16.msra.mxu0 0
    %466 = vmatprep.subr.bf16.mxu0 0
    %467 = vmatpush1.bf16.msra.mxu0 0
    %468 = vmatprep.subr.bf16.mxu0 0
    %469 = vmatpush1.bf16.msra.mxu0 0
    %470 = vmatprep.subr.bf16.mxu0 0
    %471 = vmatpush1.bf16.msra.mxu0 0
    %472 = vmatprep.mubr.bf16.mxu0 0
    %473 = vmatmul.mubr.bf16.gmra.mrb[0].mxu0 %v384
    %v474 = vpop.f32.mrb[0].mxu0
    %v475 = vadd.f32 0.0, %v474
    %v476 = vpop.f32.mrb[0].mxu0
    %v477 = vpop.f32.mrb[0].mxu0
    %v478 = vadd.f32 0.0, %v477
    %v479 = vpop.f32.mrb[0].mxu0
    %480 = vmatprep.mubr.bf16.mxu0 0
    %481 = vmatmul.mubr.bf16.gmra.mrb[0].mxu0 %v385
    %v482 = vpop.f32.mrb[0].mxu0
    %v483 = vadd.f32 0.0, %v482
    %v484 = vpop.f32.mrb[0].mxu0
    %v485 = vpop.f32.mrb[0].mxu0
    %v486 = vadd.f32 0.0, %v485
    %v487 = vpop.f32.mrb[0].mxu0
    %488 = vmatprep.mubr.bf16.mxu0 0
    %489 = vmatmul.mubr.bf16.gmra.mrb[0].mxu0 %v386
    %v490 = vpop.f32.mrb[0].mxu0
    %v491 = vadd.f32 0.0, %v490
    %v492 = vpop.f32.mrb[0].mxu0
    %v493 = vpop.f32.mrb[0].mxu0
    %v494 = vadd.f32 0.0, %v493
    %v495 = vpop.f32.mrb[0].mxu0
    %496 = vmatprep.mubr.bf16.mxu0 0
    %497 = vmatmul.mubr.bf16.gmra.mrb[0].mxu0 %v387
    %v498 = vpop.f32.mrb[0].mxu0
    %v499 = vadd.f32 0.0, %v498
    %v500 = vpop.f32.mrb[0].mxu0
    %v501 = vpop.f32.mrb[0].mxu0
    %v502 = vadd.f32 0.0, %v501
    %v503 = vpop.f32.mrb[0].mxu0
    %504 = vmatprep.mubr.bf16.mxu0 0
    %505 = vmatmul.mubr.bf16.gmra.mrb[0].mxu0 %v388
    %v506 = vpop.f32.mrb[0].mxu0
    %v507 = vadd.f32 0.0, %v506
    %v508 = vpop.f32.mrb[0].mxu0
    %v509 = vpop.f32.mrb[0].mxu0
    %v510 = vadd.f32 0.0, %v509
    %v511 = vpop.f32.mrb[0].mxu0
    %512 = vmatprep.mubr.bf16.mxu0 0
    %513 = vmatmul.mubr.bf16.gmra.mrb[0].mxu0 %v389
    %v514 = vpop.f32.mrb[0].mxu0
    %v515 = vadd.f32 0.0, %v514
    %v516 = vpop.f32.mrb[0].mxu0
    %v517 = vpop.f32.mrb[0].mxu0
    %v518 = vadd.f32 0.0, %v517
    %v519 = vpop.f32.mrb[0].mxu0
    %520 = vmatprep.mubr.bf16.mxu0 0
    %521 = vmatmul.mubr.bf16.gmra.mrb[0].mxu0 %v390
    %v522 = vpop.f32.mrb[0].mxu0
    %v523 = vadd.f32 0.0, %v522
    %v524 = vpop.f32.mrb[0].mxu0
    %v525 = vpop.f32.mrb[0].mxu0
    %v526 = vadd.f32 0.0, %v525
    %v527 = vpop.f32.mrb[0].mxu0
    %528 = vmatprep.mubr.bf16.mxu0 0
    %529 = vmatmul.mubr.bf16.gmra.mrb[0].mxu0 %v391
    %v530 = vpop.f32.mrb[0].mxu0
    %v531 = vadd.f32 0.0, %v530
    %v532 = vpop.f32.mrb[0].mxu0
    %v533 = vpop.f32.mrb[0].mxu0
    %v534 = vadd.f32 0.0, %v533
    %v535 = vpop.f32.mrb[0].mxu0
    %536 = vdwg.mxu0
    %v537 = vpack.c.bf16 %v478, %v475
    %v538 = vpack.c.bf16 %v486, %v483
    %v539 = vpack.c.bf16 %v494, %v491
    %v540 = vpack.c.bf16 %v502, %v499
    %v541 = vpack.c.bf16 %v510, %v507
    %v542 = vpack.c.bf16 %v518, %v515
    %v543 = vpack.c.bf16 %v526, %v523
    %v544 = vpack.c.bf16 %v534, %v531
    %v546 = vlaneseq
    %v547 = vshrl.u32 %v546, 7
    %v548 = vsub.s32 0, %v547
    %v549 = vrot.slane %v383, %v548
    %v567 = vunpack.c.l.b16 %v119
    %v568 = vunpack.c.l.b16 %v120
    %v569 = vunpack.c.l.b16 %v121
    %v570 = vunpack.c.l.b16 %v122
    %v571 = vunpack.c.l.b16 %v123
    %v572 = vunpack.c.l.b16 %v124
    %v573 = vunpack.c.l.b16 %v125
    %v574 = vunpack.c.l.b16 %v126
    %v575 = vunpack.c.l.b16 %v127
    %v576 = vunpack.c.l.b16 %v128
    %v577 = vunpack.c.l.b16 %v129
    %v578 = vunpack.c.l.b16 %v130
    %v579 = vunpack.c.l.b16 %v131
    %v580 = vunpack.c.l.b16 %v132
    %v581 = vunpack.c.l.b16 %v133
    %v582 = vunpack.c.l.b16 %v134
    %v583 = vpack.c.b16 %v568, %v567
    %v584 = vpack.c.b16 %v570, %v569
    %v585 = vpack.c.b16 %v572, %v571
    %v586 = vpack.c.b16 %v574, %v573
    %v587 = vpack.c.b16 %v576, %v575
    %v588 = vpack.c.b16 %v578, %v577
    %v589 = vpack.c.b16 %v580, %v579
    %v590 = vpack.c.b16 %v582, %v581
    %599 = vmatprep.subr.bf16.mxu0 0
    %600 = vmatpush1.bf16.msra.mxu0 %v537
    %601 = vmatprep.subr.bf16.mxu0 0
    %602 = vmatpush1.bf16.msra.mxu0 %v538
    %603 = vmatprep.subr.bf16.mxu0 0
    %604 = vmatpush1.bf16.msra.mxu0 %v539
    %605 = vmatprep.subr.bf16.mxu0 0
    %606 = vmatpush1.bf16.msra.mxu0 %v540
    %607 = vmatprep.subr.bf16.mxu0 0
    %608 = vmatpush1.bf16.msra.mxu0 %v541
    %609 = vmatprep.subr.bf16.mxu0 0
    %610 = vmatpush1.bf16.msra.mxu0 %v542
    %611 = vmatprep.subr.bf16.mxu0 0
    %612 = vmatpush1.bf16.msra.mxu0 %v543
    %613 = vmatprep.subr.bf16.mxu0 0
    %614 = vmatpush1.bf16.msra.mxu0 %v544
    %615 = vmatprep.subr.bf16.mxu0 0
    %616 = vmatpush1.bf16.msra.mxu0 0
    %617 = vmatprep.subr.bf16.mxu0 0
    %618 = vmatpush1.bf16.msra.mxu0 0
    %619 = vmatprep.subr.bf16.mxu0 0
    %620 = vmatpush1.bf16.msra.mxu0 0
    %621 = vmatprep.subr.bf16.mxu0 0
    %622 = vmatpush1.bf16.msra.mxu0 0
    %623 = vmatprep.subr.bf16.mxu0 0
    %624 = vmatpush1.bf16.msra.mxu0 0
    %625 = vmatprep.subr.bf16.mxu0 0
    %626 = vmatpush1.bf16.msra.mxu0 0
    %627 = vmatprep.subr.bf16.mxu0 0
    %628 = vmatpush1.bf16.msra.mxu0 0
    %629 = vmatprep.subr.bf16.mxu0 0
    %630 = vmatpush1.bf16.msra.mxu0 0
    %631 = vmatprep.mubr.bf16.mxu0 0
    %632 = vmatmul.mubr.bf16.gmra.mrb[0].mxu0 %v583
    %v633 = vpop.f32.mrb[0].mxu0
    %v634 = vadd.f32 %v549, %v633
    %v635 = vpop.f32.mrb[0].mxu0
    %v636 = vpop.f32.mrb[0].mxu0
    %v637 = vadd.f32 %v549, %v636
    %v638 = vpop.f32.mrb[0].mxu0
    %639 = vmatprep.mubr.bf16.mxu0 0
    %640 = vmatmul.mubr.bf16.gmra.mrb[0].mxu0 %v584
    %v641 = vpop.f32.mrb[0].mxu0
    %v642 = vadd.f32 %v549, %v641
    %v643 = vpop.f32.mrb[0].mxu0
    %v644 = vpop.f32.mrb[0].mxu0
    %v645 = vadd.f32 %v549, %v644
    %v646 = vpop.f32.mrb[0].mxu0
    %647 = vmatprep.mubr.bf16.mxu0 0
    %648 = vmatmul.mubr.bf16.gmra.mrb[0].mxu0 %v585
    %v649 = vpop.f32.mrb[0].mxu0
    %v650 = vadd.f32 %v549, %v649
    %v651 = vpop.f32.mrb[0].mxu0
    %v652 = vpop.f32.mrb[0].mxu0
    %v653 = vadd.f32 %v549, %v652
    %v654 = vpop.f32.mrb[0].mxu0
    %655 = vmatprep.mubr.bf16.mxu0 0
    %656 = vmatmul.mubr.bf16.gmra.mrb[0].mxu0 %v586
    %v657 = vpop.f32.mrb[0].mxu0
    %v658 = vadd.f32 %v549, %v657
    %v659 = vpop.f32.mrb[0].mxu0
    %v660 = vpop.f32.mrb[0].mxu0
    %v661 = vadd.f32 %v549, %v660
    %v662 = vpop.f32.mrb[0].mxu0
    %663 = vmatprep.mubr.bf16.mxu0 0
    %664 = vmatmul.mubr.bf16.gmra.mrb[0].mxu0 %v587
    %v665 = vpop.f32.mrb[0].mxu0
    %v666 = vadd.f32 %v549, %v665
    %v667 = vpop.f32.mrb[0].mxu0
    %v668 = vpop.f32.mrb[0].mxu0
    %v669 = vadd.f32 %v549, %v668
    %v670 = vpop.f32.mrb[0].mxu0
    %671 = vmatprep.mubr.bf16.mxu0 0
    %672 = vmatmul.mubr.bf16.gmra.mrb[0].mxu0 %v588
    %v673 = vpop.f32.mrb[0].mxu0
    %v674 = vadd.f32 %v549, %v673
    %v675 = vpop.f32.mrb[0].mxu0
    %v676 = vpop.f32.mrb[0].mxu0
    %v677 = vadd.f32 %v549, %v676
    %v678 = vpop.f32.mrb[0].mxu0
    %679 = vmatprep.mubr.bf16.mxu0 0
    %680 = vmatmul.mubr.bf16.gmra.mrb[0].mxu0 %v589
    %v681 = vpop.f32.mrb[0].mxu0
    %v682 = vadd.f32 %v549, %v681
    %v683 = vpop.f32.mrb[0].mxu0
    %v684 = vpop.f32.mrb[0].mxu0
    %v685 = vadd.f32 %v549, %v684
    %v686 = vpop.f32.mrb[0].mxu0
    %687 = vmatprep.mubr.bf16.mxu0 0
    %688 = vmatmul.mubr.bf16.gmra.mrb[0].mxu0 %v590
    %v689 = vpop.f32.mrb[0].mxu0
    %v690 = vadd.f32 %v549, %v689
    %v691 = vpop.f32.mrb[0].mxu0
    %v692 = vpop.f32.mrb[0].mxu0
    %v693 = vadd.f32 %v549, %v692
    %v694 = vpop.f32.mrb[0].mxu0
    %695 = vdwg.mxu0
    %vm696 = vcmp.ge.f32.partialorder %v634, 0.0
    %vm697 = vcmp.ge.f32.partialorder %v637, 0.0
    %vm698 = vcmp.ge.f32.partialorder %v642, 0.0
    %vm699 = vcmp.ge.f32.partialorder %v645, 0.0
    %vm700 = vcmp.ge.f32.partialorder %v650, 0.0
    %vm701 = vcmp.ge.f32.partialorder %v653, 0.0
    %vm702 = vcmp.ge.f32.partialorder %v658, 0.0
    %vm703 = vcmp.ge.f32.partialorder %v661, 0.0
    %vm704 = vcmp.ge.f32.partialorder %v666, 0.0
    %vm705 = vcmp.ge.f32.partialorder %v669, 0.0
    %vm706 = vcmp.ge.f32.partialorder %v674, 0.0
    %vm707 = vcmp.ge.f32.partialorder %v677, 0.0
    %vm708 = vcmp.ge.f32.partialorder %v682, 0.0
    %vm709 = vcmp.ge.f32.partialorder %v685, 0.0
    %vm710 = vcmp.ge.f32.partialorder %v690, 0.0
    %vm711 = vcmp.ge.f32.partialorder %v693, 0.0
    %v712 = vmul.f32 %v634, 0.01
    %v713 = vmul.f32 %v637, 0.01
    %v714 = vmul.f32 %v642, 0.01
    %v715 = vmul.f32 %v645, 0.01
    %v716 = vmul.f32 %v650, 0.01
    %v717 = vmul.f32 %v653, 0.01
    %v718 = vmul.f32 %v658, 0.01
    %v719 = vmul.f32 %v661, 0.01
    %v720 = vmul.f32 %v666, 0.01
    %v721 = vmul.f32 %v669, 0.01
    %v722 = vmul.f32 %v674, 0.01
    %v723 = vmul.f32 %v677, 0.01
    %v724 = vmul.f32 %v682, 0.01
    %v725 = vmul.f32 %v685, 0.01
    %v726 = vmul.f32 %v690, 0.01
    %v727 = vmul.f32 %v693, 0.01
    %v728 = vsel %vm696, %v634, %v712
    %v729 = vsel %vm697, %v637, %v713
    %v730 = vsel %vm698, %v642, %v714
    %v731 = vsel %vm699, %v645, %v715
    %v732 = vsel %vm700, %v650, %v716
    %v733 = vsel %vm701, %v653, %v717
    %v734 = vsel %vm702, %v658, %v718
    %v735 = vsel %vm703, %v661, %v719
    %v736 = vsel %vm704, %v666, %v720
    %v737 = vsel %vm705, %v669, %v721
    %v738 = vsel %vm706, %v674, %v722
    %v739 = vsel %vm707, %v677, %v723
    %v740 = vsel %vm708, %v682, %v724
    %v741 = vsel %vm709, %v685, %v725
    %v742 = vsel %vm710, %v690, %v726
    %v743 = vsel %vm711, %v693, %v727
    %v744 = vld [vmem:[#allocation10] sm:$0xf]
    %v745 = vld [vmem:[#allocation10 + $0x4] sm:$0xf]
    %v746 = vld [vmem:[#allocation10 + $0x8] sm:$0xf]
    %v747 = vld [vmem:[#allocation10 + $0xc] sm:$0xf]
    %v748 = vld [vmem:[#allocation10 + $0x10] sm:$0xf]
    %v749 = vld [vmem:[#allocation10 + $0x14] sm:$0xf]
    %v750 = vld [vmem:[#allocation10 + $0x18] sm:$0xf]
    %v751 = vld [vmem:[#allocation10 + $0x1c] sm:$0xf]
    %v752 = vld [vmem:[#allocation10 + $0x20] sm:$0xf]
    %v753 = vld [vmem:[#allocation10 + $0x24] sm:$0xf]
    %v754 = vld [vmem:[#allocation10 + $0x28] sm:$0xf]
    %v755 = vld [vmem:[#allocation10 + $0x2c] sm:$0xf]
    %v756 = vld [vmem:[#allocation10 + $0x30] sm:$0xf]
    %v757 = vld [vmem:[#allocation10 + $0x34] sm:$0xf]
    %v758 = vld [vmem:[#allocation10 + $0x38] sm:$0xf]
    %v759 = vld [vmem:[#allocation10 + $0x3c] sm:$0xf]
    %v760 = vld [vmem:[%s7] sm:$0x1]
    %v761 = vpack.c.bf16 %v729, %v728
    %v762 = vpack.c.bf16 %v731, %v730
    %v763 = vpack.c.bf16 %v733, %v732
    %v764 = vpack.c.bf16 %v735, %v734
    %v765 = vpack.c.bf16 %v737, %v736
    %v766 = vpack.c.bf16 %v739, %v738
    %v767 = vpack.c.bf16 %v741, %v740
    %v768 = vpack.c.bf16 %v743, %v742
    %v785 = vunpack.c.l.b16 %v744
    %v786 = vunpack.c.l.b16 %v745
    %v787 = vunpack.c.l.b16 %v746
    %v788 = vunpack.c.l.b16 %v747
    %v789 = vunpack.c.l.b16 %v748
    %v790 = vunpack.c.l.b16 %v749
    %v791 = vunpack.c.l.b16 %v750
    %v792 = vunpack.c.l.b16 %v751
    %v793 = vunpack.c.l.b16 %v752
    %v794 = vunpack.c.l.b16 %v753
    %v795 = vunpack.c.l.b16 %v754
    %v796 = vunpack.c.l.b16 %v755
    %v797 = vunpack.c.l.b16 %v756
    %v798 = vunpack.c.l.b16 %v757
    %v799 = vunpack.c.l.b16 %v758
    %v800 = vunpack.c.l.b16 %v759
    %v801 = vpack.c.b16 %v786, %v785
    %v802 = vpack.c.b16 %v788, %v787
    %v803 = vpack.c.b16 %v790, %v789
    %v804 = vpack.c.b16 %v792, %v791
    %v805 = vpack.c.b16 %v794, %v793
    %v806 = vpack.c.b16 %v796, %v795
    %v807 = vpack.c.b16 %v798, %v797
    %v808 = vpack.c.b16 %v800, %v799
    %817 = vmatprep.subr.bf16.mxu0 0
    %818 = vmatpush1.bf16.msra.mxu0 %v801
    %819 = vmatprep.subr.bf16.mxu0 0
    %820 = vmatpush1.bf16.msra.mxu0 %v802
    %821 = vmatprep.subr.bf16.mxu0 0
    %822 = vmatpush1.bf16.msra.mxu0 %v803
    %823 = vmatprep.subr.bf16.mxu0 0
    %824 = vmatpush1.bf16.msra.mxu0 %v804
    %825 = vmatprep.subr.bf16.mxu0 0
    %826 = vmatpush1.bf16.msra.mxu0 %v805
    %827 = vmatprep.subr.bf16.mxu0 0
    %828 = vmatpush1.bf16.msra.mxu0 %v806
    %829 = vmatprep.subr.bf16.mxu0 0
    %830 = vmatpush1.bf16.msra.mxu0 %v807
    %831 = vmatprep.subr.bf16.mxu0 0
    %832 = vmatpush1.bf16.msra.mxu0 %v808
    %833 = vmatprep.subr.bf16.mxu0 0
    %834 = vmatpush1.bf16.msra.mxu0 0
    %835 = vmatprep.subr.bf16.mxu0 0
    %836 = vmatpush1.bf16.msra.mxu0 0
    %837 = vmatprep.subr.bf16.mxu0 0
    %838 = vmatpush1.bf16.msra.mxu0 0
    %839 = vmatprep.subr.bf16.mxu0 0
    %840 = vmatpush1.bf16.msra.mxu0 0
    %841 = vmatprep.subr.bf16.mxu0 0
    %842 = vmatpush1.bf16.msra.mxu0 0
    %843 = vmatprep.subr.bf16.mxu0 0
    %844 = vmatpush1.bf16.msra.mxu0 0
    %845 = vmatprep.subr.bf16.mxu0 0
    %846 = vmatpush1.bf16.msra.mxu0 0
    %847 = vmatprep.subr.bf16.mxu0 0
    %848 = vmatpush1.bf16.msra.mxu0 0
    %849 = vmatprep.mubr.bf16.mxu0 0
    %850 = vmatmul.mubr.bf16.gmra.mrb[0].mxu0 %v761
    %v851 = vpop.f32.mrb[0].mxu0
    %v852 = vadd.f32 0.0, %v851
    %v853 = vpop.f32.mrb[0].mxu0
    %v854 = vpop.f32.mrb[0].mxu0
    %v855 = vadd.f32 0.0, %v854
    %v856 = vpop.f32.mrb[0].mxu0
    %857 = vmatprep.mubr.bf16.mxu0 0
    %858 = vmatmul.mubr.bf16.gmra.mrb[0].mxu0 %v762
    %v859 = vpop.f32.mrb[0].mxu0
    %v860 = vadd.f32 0.0, %v859
    %v861 = vpop.f32.mrb[0].mxu0
    %v862 = vpop.f32.mrb[0].mxu0
    %v863 = vadd.f32 0.0, %v862
    %v864 = vpop.f32.mrb[0].mxu0
    %865 = vmatprep.mubr.bf16.mxu0 0
    %866 = vmatmul.mubr.bf16.gmra.mrb[0].mxu0 %v763
    %v867 = vpop.f32.mrb[0].mxu0
    %v868 = vadd.f32 0.0, %v867
    %v869 = vpop.f32.mrb[0].mxu0
    %v870 = vpop.f32.mrb[0].mxu0
    %v871 = vadd.f32 0.0, %v870
    %v872 = vpop.f32.mrb[0].mxu0
    %873 = vmatprep.mubr.bf16.mxu0 0
    %874 = vmatmul.mubr.bf16.gmra.mrb[0].mxu0 %v764
    %v875 = vpop.f32.mrb[0].mxu0
    %v876 = vadd.f32 0.0, %v875
    %v877 = vpop.f32.mrb[0].mxu0
    %v878 = vpop.f32.mrb[0].mxu0
    %v879 = vadd.f32 0.0, %v878
    %v880 = vpop.f32.mrb[0].mxu0
    %881 = vmatprep.mubr.bf16.mxu0 0
    %882 = vmatmul.mubr.bf16.gmra.mrb[0].mxu0 %v765
    %v883 = vpop.f32.mrb[0].mxu0
    %v884 = vadd.f32 0.0, %v883
    %v885 = vpop.f32.mrb[0].mxu0
    %v886 = vpop.f32.mrb[0].mxu0
    %v887 = vadd.f32 0.0, %v886
    %v888 = vpop.f32.mrb[0].mxu0
    %889 = vmatprep.mubr.bf16.mxu0 0
    %890 = vmatmul.mubr.bf16.gmra.mrb[0].mxu0 %v766
    %v891 = vpop.f32.mrb[0].mxu0
    %v892 = vadd.f32 0.0, %v891
    %v893 = vpop.f32.mrb[0].mxu0
    %v894 = vpop.f32.mrb[0].mxu0
    %v895 = vadd.f32 0.0, %v894
    %v896 = vpop.f32.mrb[0].mxu0
    %897 = vmatprep.mubr.bf16.mxu0 0
    %898 = vmatmul.mubr.bf16.gmra.mrb[0].mxu0 %v767
    %v899 = vpop.f32.mrb[0].mxu0
    %v900 = vadd.f32 0.0, %v899
    %v901 = vpop.f32.mrb[0].mxu0
    %v902 = vpop.f32.mrb[0].mxu0
    %v903 = vadd.f32 0.0, %v902
    %v904 = vpop.f32.mrb[0].mxu0
    %905 = vmatprep.mubr.bf16.mxu0 0
    %906 = vmatmul.mubr.bf16.gmra.mrb[0].mxu0 %v768
    %v907 = vpop.f32.mrb[0].mxu0
    %v908 = vadd.f32 0.0, %v907
    %v909 = vpop.f32.mrb[0].mxu0
    %v910 = vpop.f32.mrb[0].mxu0
    %v911 = vadd.f32 0.0, %v910
    %v912 = vpop.f32.mrb[0].mxu0
    %913 = vdwg.mxu0
    %v914 = vpack.c.bf16 %v855, %v852
    %v915 = vpack.c.bf16 %v863, %v860
    %v916 = vpack.c.bf16 %v871, %v868
    %v917 = vpack.c.bf16 %v879, %v876
    %v918 = vpack.c.bf16 %v887, %v884
    %v919 = vpack.c.bf16 %v895, %v892
    %v920 = vpack.c.bf16 %v903, %v900
    %v921 = vpack.c.bf16 %v911, %v908
    %v923 = vlaneseq
    %v924 = vshrl.u32 %v923, 7
    %v925 = vsub.s32 0, %v924
    %v926 = vrot.slane %v760, %v925
    %928 = vmatprep.subr.bf16.mxu0 0
    %929 = vmatpush1.bf16.msra.mxu0 %v914
    %930 = vmatprep.subr.bf16.mxu0 0
    %931 = vmatpush1.bf16.msra.mxu0 %v915
    %932 = vmatprep.subr.bf16.mxu0 0
    %933 = vmatpush1.bf16.msra.mxu0 %v916
    %934 = vmatprep.subr.bf16.mxu0 0
    %935 = vmatpush1.bf16.msra.mxu0 %v917
    %936 = vmatprep.subr.bf16.mxu0 0
    %937 = vmatpush1.bf16.msra.mxu0 %v918
    %938 = vmatprep.subr.bf16.mxu0 0
    %939 = vmatpush1.bf16.msra.mxu0 %v919
    %940 = vmatprep.subr.bf16.mxu0 0
    %941 = vmatpush1.bf16.msra.mxu0 %v920
    %942 = vmatprep.subr.bf16.mxu0 0
    %943 = vmatpush1.bf16.msra.mxu0 %v921
    %944 = vmatprep.subr.bf16.mxu0 0
    %945 = vmatpush1.bf16.msra.mxu0 0
    %946 = vmatprep.subr.bf16.mxu0 0
    %947 = vmatpush1.bf16.msra.mxu0 0
    %948 = vmatprep.subr.bf16.mxu0 0
    %949 = vmatpush1.bf16.msra.mxu0 0
    %950 = vmatprep.subr.bf16.mxu0 0
    %951 = vmatpush1.bf16.msra.mxu0 0
    %952 = vmatprep.subr.bf16.mxu0 0
    %953 = vmatpush1.bf16.msra.mxu0 0
    %954 = vmatprep.subr.bf16.mxu0 0
    %955 = vmatpush1.bf16.msra.mxu0 0
    %956 = vmatprep.subr.bf16.mxu0 0
    %957 = vmatpush1.bf16.msra.mxu0 0
    %958 = vmatprep.subr.bf16.mxu0 0
    %959 = vmatpush1.bf16.msra.mxu0 0
    %960 = vmatprep.mubr.bf16.mxu0 0
    %961 = vmatmul.mubr.bf16.gmra.mrb[0].mxu0 %v583
    %v962 = vpop.f32.mrb[0].mxu0
    %v963 = vadd.f32 %v926, %v962
    %v964 = vpop.f32.mrb[0].mxu0
    %v965 = vpop.f32.mrb[0].mxu0
    %v966 = vadd.f32 %v926, %v965
    %v967 = vpop.f32.mrb[0].mxu0
    %968 = vmatprep.mubr.bf16.mxu0 0
    %969 = vmatmul.mubr.bf16.gmra.mrb[0].mxu0 %v584
    %v970 = vpop.f32.mrb[0].mxu0
    %v971 = vadd.f32 %v926, %v970
    %v972 = vpop.f32.mrb[0].mxu0
    %v973 = vpop.f32.mrb[0].mxu0
    %v974 = vadd.f32 %v926, %v973
    %v975 = vpop.f32.mrb[0].mxu0
    %976 = vmatprep.mubr.bf16.mxu0 0
    %977 = vmatmul.mubr.bf16.gmra.mrb[0].mxu0 %v585
    %v978 = vpop.f32.mrb[0].mxu0
    %v979 = vadd.f32 %v926, %v978
    %v980 = vpop.f32.mrb[0].mxu0
    %v981 = vpop.f32.mrb[0].mxu0
    %v982 = vadd.f32 %v926, %v981
    %v983 = vpop.f32.mrb[0].mxu0
    %984 = vmatprep.mubr.bf16.mxu0 0
    %985 = vmatmul.mubr.bf16.gmra.mrb[0].mxu0 %v586
    %v986 = vpop.f32.mrb[0].mxu0
    %v987 = vadd.f32 %v926, %v986
    %v988 = vpop.f32.mrb[0].mxu0
    %v989 = vpop.f32.mrb[0].mxu0
    %v990 = vadd.f32 %v926, %v989
    %v991 = vpop.f32.mrb[0].mxu0
    %992 = vmatprep.mubr.bf16.mxu0 0
    %993 = vmatmul.mubr.bf16.gmra.mrb[0].mxu0 %v587
    %v994 = vpop.f32.mrb[0].mxu0
    %v995 = vadd.f32 %v926, %v994
    %v996 = vpop.f32.mrb[0].mxu0
    %v997 = vpop.f32.mrb[0].mxu0
    %v998 = vadd.f32 %v926, %v997
    %v999 = vpop.f32.mrb[0].mxu0
    %1000 = vmatprep.mubr.bf16.mxu0 0
    %1001 = vmatmul.mubr.bf16.gmra.mrb[0].mxu0 %v588
    %v1002 = vpop.f32.mrb[0].mxu0
    %v1003 = vadd.f32 %v926, %v1002
    %v1004 = vpop.f32.mrb[0].mxu0
    %v1005 = vpop.f32.mrb[0].mxu0
    %v1006 = vadd.f32 %v926, %v1005
    %v1007 = vpop.f32.mrb[0].mxu0
    %1008 = vmatprep.mubr.bf16.mxu0 0
    %1009 = vmatmul.mubr.bf16.gmra.mrb[0].mxu0 %v589
    %v1010 = vpop.f32.mrb[0].mxu0
    %v1011 = vadd.f32 %v926, %v1010
    %v1012 = vpop.f32.mrb[0].mxu0
    %v1013 = vpop.f32.mrb[0].mxu0
    %v1014 = vadd.f32 %v926, %v1013
    %v1015 = vpop.f32.mrb[0].mxu0
    %1016 = vmatprep.mubr.bf16.mxu0 0
    %1017 = vmatmul.mubr.bf16.gmra.mrb[0].mxu0 %v590
    %v1018 = vpop.f32.mrb[0].mxu0
    %v1019 = vadd.f32 %v926, %v1018
    %v1020 = vpop.f32.mrb[0].mxu0
    %v1021 = vpop.f32.mrb[0].mxu0
    %v1022 = vadd.f32 %v926, %v1021
    %v1023 = vpop.f32.mrb[0].mxu0
    %1024 = vdwg.mxu0
    %vm1025 = vcmp.ge.f32.partialorder %v963, 0.0
    %vm1026 = vcmp.ge.f32.partialorder %v966, 0.0
    %vm1027 = vcmp.ge.f32.partialorder %v971, 0.0
    %vm1028 = vcmp.ge.f32.partialorder %v974, 0.0
    %vm1029 = vcmp.ge.f32.partialorder %v979, 0.0
    %vm1030 = vcmp.ge.f32.partialorder %v982, 0.0
    %vm1031 = vcmp.ge.f32.partialorder %v987, 0.0
    %vm1032 = vcmp.ge.f32.partialorder %v990, 0.0
    %vm1033 = vcmp.ge.f32.partialorder %v995, 0.0
    %vm1034 = vcmp.ge.f32.partialorder %v998, 0.0
    %vm1035 = vcmp.ge.f32.partialorder %v1003, 0.0
    %vm1036 = vcmp.ge.f32.partialorder %v1006, 0.0
    %vm1037 = vcmp.ge.f32.partialorder %v1011, 0.0
    %vm1038 = vcmp.ge.f32.partialorder %v1014, 0.0
    %vm1039 = vcmp.ge.f32.partialorder %v1019, 0.0
    %vm1040 = vcmp.ge.f32.partialorder %v1022, 0.0
    %v1041 = vmul.f32 %v963, 0.01
    %v1042 = vmul.f32 %v966, 0.01
    %v1043 = vmul.f32 %v971, 0.01
    %v1044 = vmul.f32 %v974, 0.01
    %v1045 = vmul.f32 %v979, 0.01
    %v1046 = vmul.f32 %v982, 0.01
    %v1047 = vmul.f32 %v987, 0.01
    %v1048 = vmul.f32 %v990, 0.01
    %v1049 = vmul.f32 %v995, 0.01
    %v1050 = vmul.f32 %v998, 0.01
    %v1051 = vmul.f32 %v1003, 0.01
    %v1052 = vmul.f32 %v1006, 0.01
    %v1053 = vmul.f32 %v1011, 0.01
    %v1054 = vmul.f32 %v1014, 0.01
    %v1055 = vmul.f32 %v1019, 0.01
    %v1056 = vmul.f32 %v1022, 0.01
    %v1057 = vsel %vm1025, %v963, %v1041
    %v1058 = vsel %vm1026, %v966, %v1042
    %v1059 = vsel %vm1027, %v971, %v1043
    %v1060 = vsel %vm1028, %v974, %v1044
    %v1061 = vsel %vm1029, %v979, %v1045
    %v1062 = vsel %vm1030, %v982, %v1046
    %v1063 = vsel %vm1031, %v987, %v1047
    %v1064 = vsel %vm1032, %v990, %v1048
    %v1065 = vsel %vm1033, %v995, %v1049
    %v1066 = vsel %vm1034, %v998, %v1050
    %v1067 = vsel %vm1035, %v1003, %v1051
    %v1068 = vsel %vm1036, %v1006, %v1052
    %v1069 = vsel %vm1037, %v1011, %v1053
    %v1070 = vsel %vm1038, %v1014, %v1054
    %v1071 = vsel %vm1039, %v1019, %v1055
    %v1072 = vsel %vm1040, %v1022, %v1056
    %v1073 = vld [vmem:[#allocation11] sm:$0xf]
    %v1074 = vld [vmem:[#allocation11 + $0x4] sm:$0xf]
    %v1075 = vld [vmem:[#allocation11 + $0x8] sm:$0xf]
    %v1076 = vld [vmem:[#allocation11 + $0xc] sm:$0xf]
    %v1077 = vld [vmem:[#allocation11 + $0x10] sm:$0xf]
    %v1078 = vld [vmem:[#allocation11 + $0x14] sm:$0xf]
    %v1079 = vld [vmem:[#allocation11 + $0x18] sm:$0xf]
    %v1080 = vld [vmem:[#allocation11 + $0x1c] sm:$0xf]
    %v1081 = vld [vmem:[#allocation11 + $0x20] sm:$0xf]
    %v1082 = vld [vmem:[#allocation11 + $0x24] sm:$0xf]
    %v1083 = vld [vmem:[#allocation11 + $0x28] sm:$0xf]
    %v1084 = vld [vmem:[#allocation11 + $0x2c] sm:$0xf]
    %v1085 = vld [vmem:[#allocation11 + $0x30] sm:$0xf]
    %v1086 = vld [vmem:[#allocation11 + $0x34] sm:$0xf]
    %v1087 = vld [vmem:[#allocation11 + $0x38] sm:$0xf]
    %v1088 = vld [vmem:[#allocation11 + $0x3c] sm:$0xf]
    %v1089 = vld [vmem:[%s9] sm:$0x1]
    %v1090 = vpack.c.bf16 %v1058, %v1057
    %v1091 = vpack.c.bf16 %v1060, %v1059
    %v1092 = vpack.c.bf16 %v1062, %v1061
    %v1093 = vpack.c.bf16 %v1064, %v1063
    %v1094 = vpack.c.bf16 %v1066, %v1065
    %v1095 = vpack.c.bf16 %v1068, %v1067
    %v1096 = vpack.c.bf16 %v1070, %v1069
    %v1097 = vpack.c.bf16 %v1072, %v1071
    %v1114 = vunpack.c.l.b16 %v1073
    %v1115 = vunpack.c.l.b16 %v1074
    %v1116 = vunpack.c.l.b16 %v1075
    %v1117 = vunpack.c.l.b16 %v1076
    %v1118 = vunpack.c.l.b16 %v1077
    %v1119 = vunpack.c.l.b16 %v1078
    %v1120 = vunpack.c.l.b16 %v1079
    %v1121 = vunpack.c.l.b16 %v1080
    %v1122 = vunpack.c.l.b16 %v1081
    %v1123 = vunpack.c.l.b16 %v1082
    %v1124 = vunpack.c.l.b16 %v1083
    %v1125 = vunpack.c.l.b16 %v1084
    %v1126 = vunpack.c.l.b16 %v1085
    %v1127 = vunpack.c.l.b16 %v1086
    %v1128 = vunpack.c.l.b16 %v1087
    %v1129 = vunpack.c.l.b16 %v1088
    %v1130 = vpack.c.b16 %v1115, %v1114
    %v1131 = vpack.c.b16 %v1117, %v1116
    %v1132 = vpack.c.b16 %v1119, %v1118
    %v1133 = vpack.c.b16 %v1121, %v1120
    %v1134 = vpack.c.b16 %v1123, %v1122
    %v1135 = vpack.c.b16 %v1125, %v1124
    %v1136 = vpack.c.b16 %v1127, %v1126
    %v1137 = vpack.c.b16 %v1129, %v1128
    %1146 = vmatprep.subr.bf16.mxu0 0
    %1147 = vmatpush1.bf16.msra.mxu0 %v1130
    %1148 = vmatprep.subr.bf16.mxu0 0
    %1149 = vmatpush1.bf16.msra.mxu0 %v1131
    %1150 = vmatprep.subr.bf16.mxu0 0
    %1151 = vmatpush1.bf16.msra.mxu0 %v1132
    %1152 = vmatprep.subr.bf16.mxu0 0
    %1153 = vmatpush1.bf16.msra.mxu0 %v1133
    %1154 = vmatprep.subr.bf16.mxu0 0
    %1155 = vmatpush1.bf16.msra.mxu0 %v1134
    %1156 = vmatprep.subr.bf16.mxu0 0
    %1157 = vmatpush1.bf16.msra.mxu0 %v1135
    %1158 = vmatprep.subr.bf16.mxu0 0
    %1159 = vmatpush1.bf16.msra.mxu0 %v1136
    %1160 = vmatprep.subr.bf16.mxu0 0
    %1161 = vmatpush1.bf16.msra.mxu0 %v1137
    %1162 = vmatprep.subr.bf16.mxu0 0
    %1163 = vmatpush1.bf16.msra.mxu0 0
    %1164 = vmatprep.subr.bf16.mxu0 0
    %1165 = vmatpush1.bf16.msra.mxu0 0
    %1166 = vmatprep.subr.bf16.mxu0 0
    %1167 = vmatpush1.bf16.msra.mxu0 0
    %1168 = vmatprep.subr.bf16.mxu0 0
    %1169 = vmatpush1.bf16.msra.mxu0 0
    %1170 = vmatprep.subr.bf16.mxu0 0
    %1171 = vmatpush1.bf16.msra.mxu0 0
    %1172 = vmatprep.subr.bf16.mxu0 0
    %1173 = vmatpush1.bf16.msra.mxu0 0
    %1174 = vmatprep.subr.bf16.mxu0 0
    %1175 = vmatpush1.bf16.msra.mxu0 0
    %1176 = vmatprep.subr.bf16.mxu0 0
    %1177 = vmatpush1.bf16.msra.mxu0 0
    %1178 = vmatprep.mubr.bf16.mxu0 0
    %1179 = vmatmul.mubr.bf16.gmra.mrb[0].mxu0 %v1090
    %v1180 = vpop.f32.mrb[0].mxu0
    %v1181 = vadd.f32 0.0, %v1180
    %v1182 = vpop.f32.mrb[0].mxu0
    %v1183 = vpop.f32.mrb[0].mxu0
    %v1184 = vadd.f32 0.0, %v1183
    %v1185 = vpop.f32.mrb[0].mxu0
    %1186 = vmatprep.mubr.bf16.mxu0 0
    %1187 = vmatmul.mubr.bf16.gmra.mrb[0].mxu0 %v1091
    %v1188 = vpop.f32.mrb[0].mxu0
    %v1189 = vadd.f32 0.0, %v1188
    %v1190 = vpop.f32.mrb[0].mxu0
    %v1191 = vpop.f32.mrb[0].mxu0
    %v1192 = vadd.f32 0.0, %v1191
    %v1193 = vpop.f32.mrb[0].mxu0
    %1194 = vmatprep.mubr.bf16.mxu0 0
    %1195 = vmatmul.mubr.bf16.gmra.mrb[0].mxu0 %v1092
    %v1196 = vpop.f32.mrb[0].mxu0
    %v1197 = vadd.f32 0.0, %v1196
    %v1198 = vpop.f32.mrb[0].mxu0
    %v1199 = vpop.f32.mrb[0].mxu0
    %v1200 = vadd.f32 0.0, %v1199
    %v1201 = vpop.f32.mrb[0].mxu0
    %1202 = vmatprep.mubr.bf16.mxu0 0
    %1203 = vmatmul.mubr.bf16.gmra.mrb[0].mxu0 %v1093
    %v1204 = vpop.f32.mrb[0].mxu0
    %v1205 = vadd.f32 0.0, %v1204
    %v1206 = vpop.f32.mrb[0].mxu0
    %v1207 = vpop.f32.mrb[0].mxu0
    %v1208 = vadd.f32 0.0, %v1207
    %v1209 = vpop.f32.mrb[0].mxu0
    %1210 = vmatprep.mubr.bf16.mxu0 0
    %1211 = vmatmul.mubr.bf16.gmra.mrb[0].mxu0 %v1094
    %v1212 = vpop.f32.mrb[0].mxu0
    %v1213 = vadd.f32 0.0, %v1212
    %v1214 = vpop.f32.mrb[0].mxu0
    %v1215 = vpop.f32.mrb[0].mxu0
    %v1216 = vadd.f32 0.0, %v1215
    %v1217 = vpop.f32.mrb[0].mxu0
    %1218 = vmatprep.mubr.bf16.mxu0 0
    %1219 = vmatmul.mubr.bf16.gmra.mrb[0].mxu0 %v1095
    %v1220 = vpop.f32.mrb[0].mxu0
    %v1221 = vadd.f32 0.0, %v1220
    %v1222 = vpop.f32.mrb[0].mxu0
    %v1223 = vpop.f32.mrb[0].mxu0
    %v1224 = vadd.f32 0.0, %v1223
    %v1225 = vpop.f32.mrb[0].mxu0
    %1226 = vmatprep.mubr.bf16.mxu0 0
    %1227 = vmatmul.mubr.bf16.gmra.mrb[0].mxu0 %v1096
    %v1228 = vpop.f32.mrb[0].mxu0
    %v1229 = vadd.f32 0.0, %v1228
    %v1230 = vpop.f32.mrb[0].mxu0
    %v1231 = vpop.f32.mrb[0].mxu0
    %v1232 = vadd.f32 0.0, %v1231
    %v1233 = vpop.f32.mrb[0].mxu0
    %1234 = vmatprep.mubr.bf16.mxu0 0
    %1235 = vmatmul.mubr.bf16.gmra.mrb[0].mxu0 %v1097
    %v1236 = vpop.f32.mrb[0].mxu0
    %v1237 = vadd.f32 0.0, %v1236
    %v1238 = vpop.f32.mrb[0].mxu0
    %v1239 = vpop.f32.mrb[0].mxu0
    %v1240 = vadd.f32 0.0, %v1239
    %v1241 = vpop.f32.mrb[0].mxu0
    %1242 = vdwg.mxu0
    %v1243 = vpack.c.bf16 %v1184, %v1181
    %v1244 = vpack.c.bf16 %v1192, %v1189
    %v1245 = vpack.c.bf16 %v1200, %v1197
    %v1246 = vpack.c.bf16 %v1208, %v1205
    %v1247 = vpack.c.bf16 %v1216, %v1213
    %v1248 = vpack.c.bf16 %v1224, %v1221
    %v1249 = vpack.c.bf16 %v1232, %v1229
    %v1250 = vpack.c.bf16 %v1240, %v1237
    %v1252 = vlaneseq
    %v1253 = vshrl.u32 %v1252, 7
    %v1254 = vsub.s32 0, %v1253
    %v1255 = vrot.slane %v1089, %v1254
    %1257 = vmatprep.subr.bf16.mxu0 0
    %1258 = vmatpush1.bf16.msra.mxu0 %v1243
    %1259 = vmatprep.subr.bf16.mxu0 0
    %1260 = vmatpush1.bf16.msra.mxu0 %v1244
    %1261 = vmatprep.subr.bf16.mxu0 0
    %1262 = vmatpush1.bf16.msra.mxu0 %v1245
    %1263 = vmatprep.subr.bf16.mxu0 0
    %1264 = vmatpush1.bf16.msra.mxu0 %v1246
    %1265 = vmatprep.subr.bf16.mxu0 0
    %1266 = vmatpush1.bf16.msra.mxu0 %v1247
    %1267 = vmatprep.subr.bf16.mxu0 0
    %1268 = vmatpush1.bf16.msra.mxu0 %v1248
    %1269 = vmatprep.subr.bf16.mxu0 0
    %1270 = vmatpush1.bf16.msra.mxu0 %v1249
    %1271 = vmatprep.subr.bf16.mxu0 0
    %1272 = vmatpush1.bf16.msra.mxu0 %v1250
    %1273 = vmatprep.subr.bf16.mxu0 0
    %1274 = vmatpush1.bf16.msra.mxu0 0
    %1275 = vmatprep.subr.bf16.mxu0 0
    %1276 = vmatpush1.bf16.msra.mxu0 0
    %1277 = vmatprep.subr.bf16.mxu0 0
    %1278 = vmatpush1.bf16.msra.mxu0 0
    %1279 = vmatprep.subr.bf16.mxu0 0
    %1280 = vmatpush1.bf16.msra.mxu0 0
    %1281 = vmatprep.subr.bf16.mxu0 0
    %1282 = vmatpush1.bf16.msra.mxu0 0
    %1283 = vmatprep.subr.bf16.mxu0 0
    %1284 = vmatpush1.bf16.msra.mxu0 0
    %1285 = vmatprep.subr.bf16.mxu0 0
    %1286 = vmatpush1.bf16.msra.mxu0 0
    %1287 = vmatprep.subr.bf16.mxu0 0
    %1288 = vmatpush1.bf16.msra.mxu0 0
    %1289 = vmatprep.mubr.bf16.mxu0 0
    %1290 = vmatmul.mubr.bf16.gmra.mrb[0].mxu0 %v583
    %v1291 = vpop.f32.mrb[0].mxu0
    %v1292 = vadd.f32 %v1255, %v1291
    %v1293 = vpop.f32.mrb[0].mxu0
    %v1294 = vpop.f32.mrb[0].mxu0
    %v1295 = vadd.f32 %v1255, %v1294
    %v1296 = vpop.f32.mrb[0].mxu0
    %1297 = vmatprep.mubr.bf16.mxu0 0
    %1298 = vmatmul.mubr.bf16.gmra.mrb[0].mxu0 %v584
    %v1299 = vpop.f32.mrb[0].mxu0
    %v1300 = vadd.f32 %v1255, %v1299
    %v1301 = vpop.f32.mrb[0].mxu0
    %v1302 = vpop.f32.mrb[0].mxu0
    %v1303 = vadd.f32 %v1255, %v1302
    %v1304 = vpop.f32.mrb[0].mxu0
    %1305 = vmatprep.mubr.bf16.mxu0 0
    %1306 = vmatmul.mubr.bf16.gmra.mrb[0].mxu0 %v585
    %v1307 = vpop.f32.mrb[0].mxu0
    %v1308 = vadd.f32 %v1255, %v1307
    %v1309 = vpop.f32.mrb[0].mxu0
    %v1310 = vpop.f32.mrb[0].mxu0
    %v1311 = vadd.f32 %v1255, %v1310
    %v1312 = vpop.f32.mrb[0].mxu0
    %1313 = vmatprep.mubr.bf16.mxu0 0
    %1314 = vmatmul.mubr.bf16.gmra.mrb[0].mxu0 %v586
    %v1315 = vpop.f32.mrb[0].mxu0
    %v1316 = vadd.f32 %v1255, %v1315
    %v1317 = vpop.f32.mrb[0].mxu0
    %v1318 = vpop.f32.mrb[0].mxu0
    %v1319 = vadd.f32 %v1255, %v1318
    %v1320 = vpop.f32.mrb[0].mxu0
    %1321 = vmatprep.mubr.bf16.mxu0 0
    %1322 = vmatmul.mubr.bf16.gmra.mrb[0].mxu0 %v587
    %v1323 = vpop.f32.mrb[0].mxu0
    %v1324 = vadd.f32 %v1255, %v1323
    %v1325 = vpop.f32.mrb[0].mxu0
    %v1326 = vpop.f32.mrb[0].mxu0
    %v1327 = vadd.f32 %v1255, %v1326
    %v1328 = vpop.f32.mrb[0].mxu0
    %1329 = vmatprep.mubr.bf16.mxu0 0
    %1330 = vmatmul.mubr.bf16.gmra.mrb[0].mxu0 %v588
    %v1331 = vpop.f32.mrb[0].mxu0
    %v1332 = vadd.f32 %v1255, %v1331
    %v1333 = vpop.f32.mrb[0].mxu0
    %v1334 = vpop.f32.mrb[0].mxu0
    %v1335 = vadd.f32 %v1255, %v1334
    %v1336 = vpop.f32.mrb[0].mxu0
    %1337 = vmatprep.mubr.bf16.mxu0 0
    %1338 = vmatmul.mubr.bf16.gmra.mrb[0].mxu0 %v589
    %v1339 = vpop.f32.mrb[0].mxu0
    %v1340 = vadd.f32 %v1255, %v1339
    %v1341 = vpop.f32.mrb[0].mxu0
    %v1342 = vpop.f32.mrb[0].mxu0
    %v1343 = vadd.f32 %v1255, %v1342
    %v1344 = vpop.f32.mrb[0].mxu0
    %1345 = vmatprep.mubr.bf16.mxu0 0
    %1346 = vmatmul.mubr.bf16.gmra.mrb[0].mxu0 %v590
    %v1347 = vpop.f32.mrb[0].mxu0
    %v1348 = vadd.f32 %v1255, %v1347
    %v1349 = vpop.f32.mrb[0].mxu0
    %v1350 = vpop.f32.mrb[0].mxu0
    %v1351 = vadd.f32 %v1255, %v1350
    %v1352 = vpop.f32.mrb[0].mxu0
    %1353 = vdwg.mxu0
    %1354 = vst [vmem:[#allocation13] sm:$0xff] %v1292
    %1355 = vst [vmem:[#allocation13 + $0x8] sm:$0xff] %v1295
    %1356 = vst [vmem:[#allocation13 + $0x10] sm:$0xff] %v1300
    %1357 = vst [vmem:[#allocation13 + $0x18] sm:$0xff] %v1303
    %1358 = vst [vmem:[#allocation13 + $0x20] sm:$0xff] %v1308
    %1359 = vst [vmem:[#allocation13 + $0x28] sm:$0xff] %v1311
    %1360 = vst [vmem:[#allocation13 + $0x30] sm:$0xff] %v1316
    %1361 = vst [vmem:[#allocation13 + $0x38] sm:$0xff] %v1319
    %1362 = vst [vmem:[#allocation13 + $0x40] sm:$0xff] %v1324
    %1363 = vst [vmem:[#allocation13 + $0x48] sm:$0xff] %v1327
    %1364 = vst [vmem:[#allocation13 + $0x50] sm:$0xff] %v1332
    %1365 = vst [vmem:[#allocation13 + $0x58] sm:$0xff] %v1335
    %1366 = vst [vmem:[#allocation13 + $0x60] sm:$0xff] %v1340
    %1367 = vst [vmem:[#allocation13 + $0x68] sm:$0xff] %v1343
    %1368 = vst [vmem:[#allocation13 + $0x70] sm:$0xff] %v1348
    %1369 = vst [vmem:[#allocation13 + $0x78] sm:$0xff] %v1351
    // Predicated region
    $region66: #{tpu_custom_call.1} parent=1 // pred_check
      _
    $region67: #{tpu_custom_call.1} parent=1 // pred_check_branch
      %1371 = sbr.rel (0) target = $region69
    $region68: #{tpu_custom_call.1} parent=1 // pred_region
      %s1373 = ssub.s32 2048, 2048
      %1374 = vsyncadd [#allocation4], %s1373
      %s1375 = sshll.u32 [#allocation13], 4
      %s1376 = int_to_ptr.vmem [resolvable:$true] %s1375
      %1381 = dma.vmem_to_hbm [thread:$0]  %s1376, 2048, %s10, [#allocation4], 128, 128, 8
    $region69: #{tpu_custom_call.1} parent=1 // pred_fallthru
      _
    // Predicated region
    $region70: #{tpu_custom_call.1} parent=1 // pred_check
      _
    $region71: #{tpu_custom_call.1} parent=1 // pred_check_branch
      %1383 = sbr.rel (0) target = $region73
    $region72: #{tpu_custom_call.1} parent=1 // pred_region
      %1384 = dma.done [#allocation4], 2048
    $region73: #{tpu_custom_call.1} parent=1 // pred_fallthru
      _
    %1385 = vsyncpa [#allocation3], 1
    %1386 = vsyncpa [#allocation6], 1
    %1387 = vsyncpa [#allocation9], 1
    %1388 = vsyncpa [#allocation12], 1
    %1389 = vsyncpa [#allocation4], 1

</llo_original>
